<compile_context>
chip_gen: v7x
topology: tpu7x:2x2x1
jax: 0.10.0
libtpu: 0.0.40
codegen_flags: <defaults>
</compile_context>

<pallas_src>
import jax
import jax.numpy as jnp
from jax import lax
from jax.experimental import pallas as pl
from jax.experimental.pallas import tpu as pltpu

EPS = 1e-5


# ----------------------------- Pallas kernel -----------------------------

def feature_kernel(x_ref, w1_ref, t1_ref, w2_ref, t2_ref, w3_ref, t3_ref, o_ref):
    # x_ref: (Nb, P, Cin)   w*_ref: (3*Cin, Cout) bf16   t*_ref: (1, Cout) f32
    # o_ref: (Nb, 256) f32  -- per-sample mean over points
    nb, p, cin = x_ref.shape
    m = nb * p

    # Per-sample boundary masks for the k=3 / pad=1 conv (computed once per grid step,
    # reused by every layer).  Row r of the flattened (m, C) activations is point
    # (r % p) of sample (r // p); shifted rows must not leak across sample boundaries.
    row = lax.broadcasted_iota(jnp.int32, (m, 1), 0)
    is_first = (row % p) == 0          # point 0     -> x[p-1] is zero padding
    is_last = (row % p) == (p - 1)     # point P-1   -> x[p+1] is zero padding

    def conv_bn_relu(h, w_ref, t_ref):
        # h: (m, C) f32.  y[p] = x[p-1]@w[0] + x[p]@w[1] + x[p+1]@w[2], expressed as
        # one im2col matmul with the BN scale already folded into w.
        c = h.shape[1]
        zrow = jnp.zeros((1, c), h.dtype)
        h_prev = jnp.where(is_first, 0.0, jnp.concatenate([zrow, h[:-1, :]], axis=0))
        h_next = jnp.where(is_last, 0.0, jnp.concatenate([h[1:, :], zrow], axis=0))
        xi = jnp.concatenate([h_prev, h, h_next], axis=-1).astype(w_ref.dtype)
        y = jnp.dot(xi, w_ref[...], preferred_element_type=jnp.float32)
        y = y + t_ref[...]             # conv bias + BN shift (f32 epilogue)
        return jnp.maximum(y, 0.0)     # ReLU

    h = x_ref[...].reshape(m, cin).astype(jnp.float32)
    h = conv_bn_relu(h, w1_ref, t1_ref)     # (m, 64)
    h = conv_bn_relu(h, w2_ref, t2_ref)     # (m, 128)
    h = conv_bn_relu(h, w3_ref, t3_ref)     # (m, 256)

    # mean over points, per sample -> lane/sublane dense (Nb, 256) store
    o_ref[...] = jnp.mean(h.reshape(nb, p, 256), axis=1)


# ----------------------------- wrapper -----------------------------

def refined_conv_model(x, params, *, block_samples=None):
    B, Fn, P, Cin = x.shape
    N = B * Fn
    (w1, t1), (w2, t2), (w3, t3) = params["conv"]
    fc_w, fc_b = params["fc"]

    # Block sizing: target ~512 im2col rows (nb * P) per grid step so the MXU M-dim is
    # well filled and per-step pipeline overhead is amortized, but keep at least two
    # grid steps when N allows so both v7x TensorCores get work (megacore "parallel").
    if block_samples is None:
        block_samples = max(1, 512 // max(P, 1))
        if N >= 2:
            block_samples = min(block_samples, (N + 1) // 2)
    nb = max(1, min(block_samples, N))
    # The (nb, 256) output block must have its sublane dim a multiple of 8 unless it
    # covers the full (padded) array extent -> round down to a multiple of 8 when we
    # have at least 8 samples, otherwise use one full-extent block.
    if nb % 8 != 0:
        nb = max(8, (nb // 8) * 8) if N >= 8 else N

    n_pad = pl.cdiv(N, nb) * nb
    xn = x.reshape(N, P, Cin)                 # no wrapper-side dtype cast (done in-kernel)
    if n_pad != N:
        # Tail samples are zero-padded; their (garbage) features are sliced off below
        # before the file-mean, so they never contaminate the result.
        xn = jnp.concatenate([xn, jnp.zeros((n_pad - N, P, Cin), xn.dtype)], axis=0)

    def full_spec(arr):
        nd = arr.ndim
        return pl.BlockSpec(arr.shape, lambda g, _nd=nd: (0,) * _nd)

    feats = pl.pallas_call(
        feature_kernel,
        out_shape=jax.ShapeDtypeStruct((n_pad, 256), jnp.float32),
        grid=(n_pad // nb,),
        in_specs=[
            pl.BlockSpec((nb, P, Cin), lambda g: (g, 0, 0)),
            full_spec(w1), full_spec(t1),
            full_spec(w2), full_spec(t2),
            full_spec(w3), full_spec(t3),
        ],
        out_specs=pl.BlockSpec((nb, 256), lambda g: (g, 0)),
        compiler_params=pltpu.CompilerParams(dimension_semantics=("parallel",)),
    )(xn, w1, t1, w2, t2, w3, t3)

    feats = feats[:N].reshape(B, Fn, 256)
    # TODO(synk): nn.Dropout in training mode omitted — inference (eval) => identity.
    # Final file-mean + Linear(256, out_dim) left to XLA (tiny; a second pallas_call
    # plus an HBM round-trip of feats would cost more than the compute, and out_dim<128
    # would force masked stores).
    return feats.mean(axis=1) @ fc_w + fc_b


# ----------------------------- params & reference -----------------------------

def init_params(key, input_dim, output_dim):
    dims = [(input_dim, 64), (64, 128), (128, 256)]
    conv_raw = []
    for i, (ci, co) in enumerate(dims):
        k = jax.random.fold_in(key, i)
        ks = jax.random.split(k, 6)
        w = 0.1 * jax.random.normal(ks[0], (3, ci, co), jnp.float32)   # (K, Cin, Cout)
        b = 0.1 * jax.random.normal(ks[1], (co,), jnp.float32)
        gamma = 1.0 + 0.1 * jax.random.normal(ks[2], (co,), jnp.float32)
        beta = 0.1 * jax.random.normal(ks[3], (co,), jnp.float32)
        mean = 0.1 * jax.random.normal(ks[4], (co,), jnp.float32)
        var = jax.random.uniform(ks[5], (co,), jnp.float32, 0.5, 1.5)
        conv_raw.append((w, b, gamma, beta, mean, var))
    kf = jax.random.fold_in(key, 99)
    kw, kb = jax.random.split(kf)
    fc_w = 0.05 * jax.random.normal(kw, (256, output_dim), jnp.float32)
    fc_b = 0.05 * jax.random.normal(kb, (output_dim,), jnp.float32)
    return conv_raw, (fc_w, fc_b)


def prepare_params(conv_raw, fc_w, fc_b, *, mxu_dtype=jnp.bfloat16):
    """Fold eval-mode BatchNorm into the conv weights/bias and pack for the kernel."""
    layers = []
    for (w, b, gamma, beta, mean, var) in conv_raw:
        s = gamma / jnp.sqrt(var + EPS)                         # BN scale (Cout,)
        w_f = (w * s[None, None, :]).reshape(-1, w.shape[-1])   # (3*Cin, Cout), scale folded
        t = (b - mean) * s + beta                               # conv bias + BN shift
        layers.append((w_f.astype(mxu_dtype), t.reshape(1, -1).astype(jnp.float32)))
    return {"conv": layers, "fc": (fc_w, fc_b)}


def reference(x, conv_raw, fc_w, fc_b):
    # pure-JAX reference mirroring the PyTorch forward (NCW conv, eval-mode BN/dropout)
    B, Fn, P, Cin = x.shape
    h = x.reshape(B * Fn, P, Cin).transpose(0, 2, 1)            # (N, C, P)
    for (w, b, gamma, beta, mean, var) in conv_raw:
        wt = jnp.transpose(w, (2, 1, 0))                        # (Cout, Cin, K) torch layout
        h = lax.conv_general_dilated(
            h, wt, window_strides=(1,), padding=((1, 1),),
            dimension_numbers=("NCH", "OIH", "NCH"))
        h = h + b[None, :, None]
        h = (h - mean[None, :, None]) * (gamma[None, :, None]
             / jnp.sqrt(var[None, :, None] + EPS)) + beta[None, :, None]
        h = jnp.maximum(h, 0.0)
    feat = h.mean(axis=2).reshape(B, Fn, -1)
    return feat.mean(axis=1) @ fc_w + fc_b


# ----------------------------- main -----------------------------

if __name__ == "__main__":
    key = jax.random.PRNGKey(0)
    # batch=4, files=4, points=16, input_dim=4, output_dim=8
    # => N = 16 samples, Nb = 8 per grid step, grid = (2,), M = Nb*P = 128 matmul rows.
    B, Fn, P, Cin, out_dim = 4, 4, 16, 4, 8
    kx, kp = jax.random.split(key)
    x = jax.random.normal(kx, (B, Fn, P, Cin), jnp.float32)

    conv_raw, (fc_w, fc_b) = init_params(kp, Cin, out_dim)
    params = prepare_params(conv_raw, fc_w, fc_b)

    out = refined_conv_model(x, params)
    out = jax.block_until_ready(out)

    ref = reference(x, conv_raw, fc_w, fc_b)
    assert out.shape == (B, out_dim), out.shape
    # bf16 MXU inputs (f32 accumulation) => slightly looser tolerance than pure f32.
    assert jnp.allclose(out, ref, atol=2e-2, rtol=2e-2), (out, ref)
    print("KERNEL_OK")
</pallas_src>

<mosaic_0001>
module attributes {stable_mosaic.version = 11 : i64} {
  func.func @feature_kernel(%arg0: i32, %arg1: memref<8x16x4xf32, #tpu.memory_space<vmem>>, %arg2: memref<12x64xbf16, #tpu.memory_space<vmem>>, %arg3: memref<1x64xf32, #tpu.memory_space<vmem>>, %arg4: memref<192x128xbf16, #tpu.memory_space<vmem>>, %arg5: memref<1x128xf32, #tpu.memory_space<vmem>>, %arg6: memref<384x256xbf16, #tpu.memory_space<vmem>>, %arg7: memref<1x256xf32, #tpu.memory_space<vmem>>, %arg8: memref<8x256xf32, #tpu.memory_space<vmem>>) attributes {dimension_semantics = [#tpu.dimension_semantics<parallel>], iteration_bounds = array<i64: 2>, scalar_prefetch = 0 : i64, scratch_operands = 0 : i64, tpu.core_type = #tpu.core_type<tc>, window_params = [{transform_indices = @transform_0, window_bounds = array<i64: 8, 16, 4>}, {pipeline_mode = #tpu.pipeline_mode<synchronous>, transform_indices = @transform_1, window_bounds = array<i64: 12, 64>}, {pipeline_mode = #tpu.pipeline_mode<synchronous>, transform_indices = @transform_2, window_bounds = array<i64: 1, 64>}, {pipeline_mode = #tpu.pipeline_mode<synchronous>, transform_indices = @transform_3, window_bounds = array<i64: 192, 128>}, {pipeline_mode = #tpu.pipeline_mode<synchronous>, transform_indices = @transform_4, window_bounds = array<i64: 1, 128>}, {pipeline_mode = #tpu.pipeline_mode<synchronous>, transform_indices = @transform_5, window_bounds = array<i64: 384, 256>}, {pipeline_mode = #tpu.pipeline_mode<synchronous>, transform_indices = @transform_6, window_bounds = array<i64: 1, 256>}, {transform_indices = @transform_7, window_bounds = array<i64: 8, 256>}]} {
    %0 = tpu.iota {dimensions = array<i32: 0>} : vector<128x1xi32>
    %c16_i32 = arith.constant 16 : i32
    %c0_i32 = arith.constant 0 : i32
    %1 = arith.cmpi eq, %c16_i32, %c0_i32 : i32
    %c1_i32 = arith.constant 1 : i32
    %2 = arith.select %1, %c1_i32, %c16_i32 : i32
    %3 = vector.broadcast %2 : i32 to vector<128x1xi32>
    %4 = arith.remsi %0, %3 : vector<128x1xi32>
    %c0_i32_0 = arith.constant 0 : i32
    %5 = vector.broadcast %c0_i32_0 : i32 to vector<128x1xi32>
    %6 = arith.cmpi ne, %4, %5 : vector<128x1xi32>
    %c0_i32_1 = arith.constant 0 : i32
    %7 = vector.broadcast %c0_i32_1 : i32 to vector<128x1xi32>
    %8 = arith.cmpi slt, %4, %7 : vector<128x1xi32>
    %c0_i32_2 = arith.constant 0 : i32
    %9 = arith.cmpi slt, %2, %c0_i32_2 : i32
    %10 = vector.broadcast %9 : i1 to vector<128x1xi1>
    %11 = vector.broadcast %10 : vector<128x1xi1> to vector<128x1xi1>
    %12 = arith.xori %8, %11 : vector<128x1xi1>
    %13 = arith.andi %12, %6 : vector<128x1xi1>
    %14 = vector.broadcast %2 : i32 to vector<128x1xi32>
    %15 = arith.addi %4, %14 : vector<128x1xi32>
    %16 = arith.select %13, %15, %4 : vector<128x1xi1>, vector<128x1xi32>
    %c0_i32_3 = arith.constant 0 : i32
    %17 = vector.broadcast %c0_i32_3 : i32 to vector<128x1xi32>
    %18 = arith.cmpi eq, %16, %17 : vector<128x1xi32>
    %c16_i32_4 = arith.constant 16 : i32
    %c0_i32_5 = arith.constant 0 : i32
    %19 = arith.cmpi eq, %c16_i32_4, %c0_i32_5 : i32
    %c1_i32_6 = arith.constant 1 : i32
    %20 = arith.select %19, %c1_i32_6, %c16_i32_4 : i32
    %21 = vector.broadcast %20 : i32 to vector<128x1xi32>
    %22 = arith.remsi %0, %21 : vector<128x1xi32>
    %c0_i32_7 = arith.constant 0 : i32
    %23 = vector.broadcast %c0_i32_7 : i32 to vector<128x1xi32>
    %24 = arith.cmpi ne, %22, %23 : vector<128x1xi32>
    %c0_i32_8 = arith.constant 0 : i32
    %25 = vector.broadcast %c0_i32_8 : i32 to vector<128x1xi32>
    %26 = arith.cmpi slt, %22, %25 : vector<128x1xi32>
    %c0_i32_9 = arith.constant 0 : i32
    %27 = arith.cmpi slt, %20, %c0_i32_9 : i32
    %28 = vector.broadcast %27 : i1 to vector<128x1xi1>
    %29 = vector.broadcast %28 : vector<128x1xi1> to vector<128x1xi1>
    %30 = arith.xori %26, %29 : vector<128x1xi1>
    %31 = arith.andi %30, %24 : vector<128x1xi1>
    %32 = vector.broadcast %20 : i32 to vector<128x1xi32>
    %33 = arith.addi %22, %32 : vector<128x1xi32>
    %34 = arith.select %31, %33, %22 : vector<128x1xi1>, vector<128x1xi32>
    %c15_i32 = arith.constant 15 : i32
    %35 = vector.broadcast %c15_i32 : i32 to vector<128x1xi32>
    %36 = arith.cmpi eq, %34, %35 : vector<128x1xi32>
    %c0 = arith.constant 0 : index
    %c0_10 = arith.constant 0 : index
    %c0_11 = arith.constant 0 : index
    %37 = vector.load %arg1[%c0, %c0_10, %c0_11] : memref<8x16x4xf32, #tpu.memory_space<vmem>>, vector<8x16x4xf32>
    %38 = vector.shape_cast %37 : vector<8x16x4xf32> to vector<128x4xf32>
    %cst = arith.constant 0.000000e+00 : f32
    %39 = vector.broadcast %cst : f32 to vector<1x4xf32>
    %40 = vector.extract_strided_slice %38 {offsets = [0, 0], sizes = [127, 4], strides = [1, 1]} : vector<128x4xf32> to vector<127x4xf32>
    %41 = tpu.concatenate %39, %40 in 0 : vector<1x4xf32>, vector<127x4xf32> -> vector<128x4xf32>
    %cst_12 = arith.constant 0.000000e+00 : f32
    %42 = vector.shape_cast %18 : vector<128x1xi1> to vector<128x1xi1>
    %43 = vector.broadcast %42 : vector<128x1xi1> to vector<128x4xi1>
    %44 = vector.broadcast %cst_12 : f32 to vector<128x4xf32>
    %45 = arith.select %43, %44, %41 : vector<128x4xi1>, vector<128x4xf32>
    %46 = vector.extract_strided_slice %38 {offsets = [1, 0], sizes = [127, 4], strides = [1, 1]} : vector<128x4xf32> to vector<127x4xf32>
    %47 = tpu.concatenate %46, %39 in 0 : vector<127x4xf32>, vector<1x4xf32> -> vector<128x4xf32>
    %cst_13 = arith.constant 0.000000e+00 : f32
    %48 = vector.shape_cast %36 : vector<128x1xi1> to vector<128x1xi1>
    %49 = vector.broadcast %48 : vector<128x1xi1> to vector<128x4xi1>
    %50 = vector.broadcast %cst_13 : f32 to vector<128x4xf32>
    %51 = arith.select %49, %50, %47 : vector<128x4xi1>, vector<128x4xf32>
    %52 = tpu.concatenate %45, %38, %51 in 1 : vector<128x4xf32>, vector<128x4xf32>, vector<128x4xf32> -> vector<128x12xf32>
    %53 = arith.truncf %52 : vector<128x12xf32> to vector<128x12xbf16>
    %c0_14 = arith.constant 0 : index
    %c0_15 = arith.constant 0 : index
    %54 = vector.load %arg2[%c0_14, %c0_15] : memref<12x64xbf16, #tpu.memory_space<vmem>>, vector<12x64xbf16>
    %cst_16 = arith.constant dense<0.000000e+00> : vector<128x64xf32>
    %55 = tpu.matmul %53, %54, %cst_16 {dimension_numbers = #tpu.dot_dimension_numbers<[1], [0], [0], [1], [0, 0, 1, 1], [], []>} : vector<128x12xbf16>, vector<12x64xbf16>, vector<128x64xf32> -> vector<128x64xf32>
    %c0_17 = arith.constant 0 : index
    %c0_18 = arith.constant 0 : index
    %56 = vector.load %arg3[%c0_17, %c0_18] : memref<1x64xf32, #tpu.memory_space<vmem>>, vector<1x64xf32>
    %57 = vector.broadcast %56 : vector<1x64xf32> to vector<128x64xf32>
    %58 = arith.addf %55, %57 : vector<128x64xf32>
    %cst_19 = arith.constant 0.000000e+00 : f32
    %59 = vector.broadcast %cst_19 : f32 to vector<128x64xf32>
    %60 = arith.maximumf %58, %59 : vector<128x64xf32>
    %cst_20 = arith.constant 0.000000e+00 : f32
    %61 = vector.broadcast %cst_20 : f32 to vector<1x64xf32>
    %62 = vector.extract_strided_slice %60 {offsets = [0, 0], sizes = [127, 64], strides = [1, 1]} : vector<128x64xf32> to vector<127x64xf32>
    %63 = tpu.concatenate %61, %62 in 0 : vector<1x64xf32>, vector<127x64xf32> -> vector<128x64xf32>
    %cst_21 = arith.constant 0.000000e+00 : f32
    %64 = vector.shape_cast %18 : vector<128x1xi1> to vector<128x1xi1>
    %65 = vector.broadcast %64 : vector<128x1xi1> to vector<128x64xi1>
    %66 = vector.broadcast %cst_21 : f32 to vector<128x64xf32>
    %67 = arith.select %65, %66, %63 : vector<128x64xi1>, vector<128x64xf32>
    %68 = vector.extract_strided_slice %60 {offsets = [1, 0], sizes = [127, 64], strides = [1, 1]} : vector<128x64xf32> to vector<127x64xf32>
    %69 = tpu.concatenate %68, %61 in 0 : vector<127x64xf32>, vector<1x64xf32> -> vector<128x64xf32>
    %cst_22 = arith.constant 0.000000e+00 : f32
    %70 = vector.shape_cast %36 : vector<128x1xi1> to vector<128x1xi1>
    %71 = vector.broadcast %70 : vector<128x1xi1> to vector<128x64xi1>
    %72 = vector.broadcast %cst_22 : f32 to vector<128x64xf32>
    %73 = arith.select %71, %72, %69 : vector<128x64xi1>, vector<128x64xf32>
    %74 = tpu.concatenate %67, %60, %73 in 1 : vector<128x64xf32>, vector<128x64xf32>, vector<128x64xf32> -> vector<128x192xf32>
    %75 = arith.truncf %74 : vector<128x192xf32> to vector<128x192xbf16>
    %c0_23 = arith.constant 0 : index
    %c0_24 = arith.constant 0 : index
    %76 = vector.load %arg4[%c0_23, %c0_24] : memref<192x128xbf16, #tpu.memory_space<vmem>>, vector<192x128xbf16>
    %cst_25 = arith.constant dense<0.000000e+00> : vector<128x128xf32>
    %77 = tpu.matmul %75, %76, %cst_25 {dimension_numbers = #tpu.dot_dimension_numbers<[1], [0], [0], [1], [0, 0, 1, 1], [], []>} : vector<128x192xbf16>, vector<192x128xbf16>, vector<128x128xf32> -> vector<128x128xf32>
    %c0_26 = arith.constant 0 : index
    %c0_27 = arith.constant 0 : index
    %78 = vector.load %arg5[%c0_26, %c0_27] : memref<1x128xf32, #tpu.memory_space<vmem>>, vector<1x128xf32>
    %79 = vector.broadcast %78 : vector<1x128xf32> to vector<128x128xf32>
    %80 = arith.addf %77, %79 : vector<128x128xf32>
    %cst_28 = arith.constant 0.000000e+00 : f32
    %81 = vector.broadcast %cst_28 : f32 to vector<128x128xf32>
    %82 = arith.maximumf %80, %81 : vector<128x128xf32>
    %cst_29 = arith.constant 0.000000e+00 : f32
    %83 = vector.broadcast %cst_29 : f32 to vector<1x128xf32>
    %84 = vector.extract_strided_slice %82 {offsets = [0, 0], sizes = [127, 128], strides = [1, 1]} : vector<128x128xf32> to vector<127x128xf32>
    %85 = tpu.concatenate %83, %84 in 0 : vector<1x128xf32>, vector<127x128xf32> -> vector<128x128xf32>
    %cst_30 = arith.constant 0.000000e+00 : f32
    %86 = vector.shape_cast %18 : vector<128x1xi1> to vector<128x1xi1>
    %87 = vector.broadcast %86 : vector<128x1xi1> to vector<128x128xi1>
    %88 = vector.broadcast %cst_30 : f32 to vector<128x128xf32>
    %89 = arith.select %87, %88, %85 : vector<128x128xi1>, vector<128x128xf32>
    %90 = vector.extract_strided_slice %82 {offsets = [1, 0], sizes = [127, 128], strides = [1, 1]} : vector<128x128xf32> to vector<127x128xf32>
    %91 = tpu.concatenate %90, %83 in 0 : vector<127x128xf32>, vector<1x128xf32> -> vector<128x128xf32>
    %cst_31 = arith.constant 0.000000e+00 : f32
    %92 = vector.shape_cast %36 : vector<128x1xi1> to vector<128x1xi1>
    %93 = vector.broadcast %92 : vector<128x1xi1> to vector<128x128xi1>
    %94 = vector.broadcast %cst_31 : f32 to vector<128x128xf32>
    %95 = arith.select %93, %94, %91 : vector<128x128xi1>, vector<128x128xf32>
    %96 = tpu.concatenate %89, %82, %95 in 1 : vector<128x128xf32>, vector<128x128xf32>, vector<128x128xf32> -> vector<128x384xf32>
    %97 = arith.truncf %96 : vector<128x384xf32> to vector<128x384xbf16>
    %c0_32 = arith.constant 0 : index
    %c0_33 = arith.constant 0 : index
    %98 = vector.load %arg6[%c0_32, %c0_33] : memref<384x256xbf16, #tpu.memory_space<vmem>>, vector<384x256xbf16>
    %cst_34 = arith.constant dense<0.000000e+00> : vector<128x256xf32>
    %99 = tpu.matmul %97, %98, %cst_34 {dimension_numbers = #tpu.dot_dimension_numbers<[1], [0], [0], [1], [0, 0, 1, 1], [], []>} : vector<128x384xbf16>, vector<384x256xbf16>, vector<128x256xf32> -> vector<128x256xf32>
    %c0_35 = arith.constant 0 : index
    %c0_36 = arith.constant 0 : index
    %100 = vector.load %arg7[%c0_35, %c0_36] : memref<1x256xf32, #tpu.memory_space<vmem>>, vector<1x256xf32>
    %101 = vector.broadcast %100 : vector<1x256xf32> to vector<128x256xf32>
    %102 = arith.addf %99, %101 : vector<128x256xf32>
    %cst_37 = arith.constant 0.000000e+00 : f32
    %103 = vector.broadcast %cst_37 : f32 to vector<128x256xf32>
    %104 = arith.maximumf %102, %103 : vector<128x256xf32>
    %105 = vector.shape_cast %104 : vector<128x256xf32> to vector<8x16x256xf32>
    %cst_38 = arith.constant dense<0.000000e+00> : vector<8x256xf32>
    %106 = vector.multi_reduction <add>, %105, %cst_38 [1] : vector<8x16x256xf32> to vector<8x256xf32>
    %cst_39 = arith.constant 1.600000e+01 : f32
    %107 = vector.broadcast %cst_39 : f32 to vector<8x256xf32>
    %108 = arith.divf %106, %107 : vector<8x256xf32>
    %c0_40 = arith.constant 0 : index
    %c0_41 = arith.constant 0 : index
    %109 = vector.load %arg8[%c0_40, %c0_41] : memref<8x256xf32, #tpu.memory_space<vmem>>, vector<8x256xf32>
    tpu.vector_store %arg8[%c0_40, %c0_41], %108 {strides = array<i32>} : memref<8x256xf32, #tpu.memory_space<vmem>>, vector<8x256xf32>,
    return
  }
  func.func @transform_0(%arg0: i32) -> (i32, i32, i32) {
    %c0_i32 = arith.constant 0 : i32
    %c0_i32_0 = arith.constant 0 : i32
    %c0_i32_1 = arith.constant 0 : i32
    return %arg0, %c0_i32, %c0_i32_0 : i32, i32, i32
  }
  func.func @transform_1(%arg0: i32) -> (i32, i32) {
    %c0_i32 = arith.constant 0 : i32
    %c0_i32_0 = arith.constant 0 : i32
    %c0_i32_1 = arith.constant 0 : i32
    return %c0_i32, %c0_i32_0 : i32, i32
  }
  func.func @transform_2(%arg0: i32) -> (i32, i32) {
    %c0_i32 = arith.constant 0 : i32
    %c0_i32_0 = arith.constant 0 : i32
    %c0_i32_1 = arith.constant 0 : i32
    return %c0_i32, %c0_i32_0 : i32, i32
  }
  func.func @transform_3(%arg0: i32) -> (i32, i32) {
    %c0_i32 = arith.constant 0 : i32
    %c0_i32_0 = arith.constant 0 : i32
    %c0_i32_1 = arith.constant 0 : i32
    return %c0_i32, %c0_i32_0 : i32, i32
  }
  func.func @transform_4(%arg0: i32) -> (i32, i32) {
    %c0_i32 = arith.constant 0 : i32
    %c0_i32_0 = arith.constant 0 : i32
    %c0_i32_1 = arith.constant 0 : i32
    return %c0_i32, %c0_i32_0 : i32, i32
  }
  func.func @transform_5(%arg0: i32) -> (i32, i32) {
    %c0_i32 = arith.constant 0 : i32
    %c0_i32_0 = arith.constant 0 : i32
    %c0_i32_1 = arith.constant 0 : i32
    return %c0_i32, %c0_i32_0 : i32, i32
  }
  func.func @transform_6(%arg0: i32) -> (i32, i32) {
    %c0_i32 = arith.constant 0 : i32
    %c0_i32_0 = arith.constant 0 : i32
    %c0_i32_1 = arith.constant 0 : i32
    return %c0_i32, %c0_i32_0 : i32, i32
  }
  func.func @transform_7(%arg0: i32) -> (i32, i32) {
    %c0_i32 = arith.constant 0 : i32
    %c0_i32_0 = arith.constant 0 : i32
    return %arg0, %c0_i32 : i32, i32
  }
}

</mosaic_0001>

<llo_original>
// kernel: tpu_custom_call.1
$region0: #{tpu_custom_call.1}
  #allocation0 [shape = 'u32[]', space=smem, size = 0x4, offset = 0x4, fixed_abs, tag = 'smem constant byte address 0x4 - core index']
  #allocation1 [shape = 'u32[144,128]{1,0:T(1,128)}', space=vmem, size = 0x12000, scoped, tag = 'internal scratch']
  %s0 = inlined_call_operand.vmem [shape: f32[16,16,4], index: 0, kind: input, shape index: {}]
  %s1 = inlined_call_operand.vmem [shape: bf16[12,64], index: 1, kind: input, shape index: {}]
  %s2 = inlined_call_operand.vmem [shape: f32[1,64], index: 2, kind: input, shape index: {}]
  %s3 = inlined_call_operand.vmem [shape: bf16[192,128], index: 3, kind: input, shape index: {}]
  %s4 = inlined_call_operand.vmem [shape: f32[1,128], index: 4, kind: input, shape index: {}]
  %s5 = inlined_call_operand.hbm [shape: bf16[384,256], index: 5, kind: input, shape index: {}]
  %s6 = inlined_call_operand.vmem [shape: f32[1,256], index: 6, kind: input, shape index: {}]
  %s7 = inlined_call_operand.hbm [shape: f32[16,256], index: 7, kind: output, shape index: {}]
  %s8 = sld [smem:[#allocation0]]
  $region65: #{tpu_custom_call.1} parent=0
    _
  %s10 = ssub.s32 1, %s8
  %s11 = scalar_select 0, %s10, %s8
  $region1: #{tpu_custom_call.1} parent=0
    #allocation2 [shape = 'u8[196608]{0}', space=vmem, size = 0x30000, scoped, tag = 'input window, operand 5, single buffered']
    #allocation3 [shape = 's32[2]{0}', space=sflag, size = 0x8, scoped, tag = 'scoped memory for tpu_custom_call.1']
    #allocation4 [shape = 's32[2]{0}', space=sflag, size = 0x8, scoped, tag = 'scoped memory for tpu_custom_call.1']
    #allocation5 [shape = 'u8[16384]{0}', space=vmem, size = 0x4000, scoped, tag = 'output window, operand 0']
    %12 = vsyncpa [#allocation3], 0
    %13 = vsyncpa [#allocation4], 0
    %s14 = scalar_lea.sflag [#allocation4], 1
    %15 = vsyncpa %s14, 0
    loop: start=0, step=1, limit=4
    $region2: #{tpu_custom_call.1} parent=1 // loop_pre_header
      _
    $region3: #{tpu_custom_call.1} parent=1 // loop_header
      %s17 = sphi 0, %s21
      %p18 = scmp.ge.s32.totalorder %s17, 4
      %s27 = sphi 0, %s29
      %s30 = sphi 0, %s27
      %s31 = sphi 0, %s30
      %s47 = sphi 0, %s31
      %s51 = sphi 0, %s51
      %s53 = sphi 0, %s51
      %s54 = sphi 0, %s53
      %s68 = sphi 0, %s54
      %s72 = sphi 0, %s72
      %s74 = sphi 0, %s72
      %s75 = sphi 0, %s74
      %s89 = sphi 0, %s75
      %s93 = sphi 0, %s93
      %s95 = sphi 0, %s93
      %s96 = sphi 0, %s95
      %s110 = sphi 0, %s96
      %s114 = sphi 0, %s114
      %s116 = sphi 0, %s114
      %s117 = sphi 0, %s116
      %s131 = sphi 0, %s117
      %s135 = sphi 0, %s135
      %s137 = sphi 0, %s135
      %s138 = sphi 0, %s137
      %s152 = sphi 0, %s138
      %s156 = sphi 0, %s156
      %s158 = sphi 0, %s156
      %s159 = sphi 0, %s158
      %s173 = sphi 0, %s159
      %s179 = sphi 0, %s181
      %s182 = sphi 0, %s179
      %s183 = sphi 0, %s182
      %s199 = sphi 0, %s183
    $region4: #{tpu_custom_call.1} parent=1 // loop_header_branch
      %20 = sbr.rel (%p18) target = $region8
    $region5: #{tpu_custom_call.1} parent=1 // loop_body
      %s22 = ssub.s32 %s17, 1
      %s23 = ssub.s32 %s17, 2
      %s24 = sadd.s32 %s17, 1
      %s25 = ssub.s32 %s17, %s24
      %p26 = scmp.eq.s32.totalorder %s25, 0
      %s28 = sadd.s32 %s27, 1
      %s29 = scalar_select %p26, %s27, %s28
      %p32 = pneg %p26
      %p33 = scmp.eq.s32.totalorder %s17, 1
      %p34 = por %p32, %p33
      %p35 = scmp.ne.s32.totalorder %s27, %s30
      %p36 = scmp.eq.s32.totalorder %s17, 0
      %p37 = por %p35, %p36
      %p38 = scmp.ne.s32.totalorder %s27, %s30
      %p39 = scmp.eq.s32.totalorder %s22, 1
      %p40 = por %p38, %p39
      %p41 = scmp.ne.s32.totalorder %s30, %s31
      %p42 = scmp.eq.s32.totalorder %s22, 0
      %p43 = por %p41, %p42
      %p44 = scmp.ne.s32.totalorder %s30, %s31
      %p45 = scmp.eq.s32.totalorder %s23, 1
      %p46 = por %p44, %p45
      %p48 = scmp.ne.s32.totalorder %s31, %s47
      %p49 = scmp.eq.s32.totalorder %s23, 0
      %p50 = por %p48, %p49
      %s52 = sadd.s32 %s51, 1
      %p55 = scmp.eq.s32.totalorder %s17, 1
      %p56 = scmp.ne.s32.totalorder %s51, %s53
      %p57 = scmp.eq.s32.totalorder %s17, 0
      %p58 = por %p56, %p57
      %p59 = scmp.ne.s32.totalorder %s51, %s53
      %p60 = scmp.eq.s32.totalorder %s22, 1
      %p61 = por %p59, %p60
      %p62 = scmp.ne.s32.totalorder %s53, %s54
      %p63 = scmp.eq.s32.totalorder %s22, 0
      %p64 = por %p62, %p63
      %p65 = scmp.ne.s32.totalorder %s53, %s54
      %p66 = scmp.eq.s32.totalorder %s23, 1
      %p67 = por %p65, %p66
      %p69 = scmp.ne.s32.totalorder %s54, %s68
      %p70 = scmp.eq.s32.totalorder %s23, 0
      %p71 = por %p69, %p70
      %s73 = sadd.s32 %s72, 1
      %p76 = scmp.eq.s32.totalorder %s17, 1
      %p77 = scmp.ne.s32.totalorder %s72, %s74
      %p78 = scmp.eq.s32.totalorder %s17, 0
      %p79 = por %p77, %p78
      %p80 = scmp.ne.s32.totalorder %s72, %s74
      %p81 = scmp.eq.s32.totalorder %s22, 1
      %p82 = por %p80, %p81
      %p83 = scmp.ne.s32.totalorder %s74, %s75
      %p84 = scmp.eq.s32.totalorder %s22, 0
      %p85 = por %p83, %p84
      %p86 = scmp.ne.s32.totalorder %s74, %s75
      %p87 = scmp.eq.s32.totalorder %s23, 1
      %p88 = por %p86, %p87
      %p90 = scmp.ne.s32.totalorder %s75, %s89
      %p91 = scmp.eq.s32.totalorder %s23, 0
      %p92 = por %p90, %p91
      %s94 = sadd.s32 %s93, 1
      %p97 = scmp.eq.s32.totalorder %s17, 1
      %p98 = scmp.ne.s32.totalorder %s93, %s95
      %p99 = scmp.eq.s32.totalorder %s17, 0
      %p100 = por %p98, %p99
      %p101 = scmp.ne.s32.totalorder %s93, %s95
      %p102 = scmp.eq.s32.totalorder %s22, 1
      %p103 = por %p101, %p102
      %p104 = scmp.ne.s32.totalorder %s95, %s96
      %p105 = scmp.eq.s32.totalorder %s22, 0
      %p106 = por %p104, %p105
      %p107 = scmp.ne.s32.totalorder %s95, %s96
      %p108 = scmp.eq.s32.totalorder %s23, 1
      %p109 = por %p107, %p108
      %p111 = scmp.ne.s32.totalorder %s96, %s110
      %p112 = scmp.eq.s32.totalorder %s23, 0
      %p113 = por %p111, %p112
      %s115 = sadd.s32 %s114, 1
      %p118 = scmp.eq.s32.totalorder %s17, 1
      %p119 = scmp.ne.s32.totalorder %s114, %s116
      %p120 = scmp.eq.s32.totalorder %s17, 0
      %p121 = por %p119, %p120
      %p122 = scmp.ne.s32.totalorder %s114, %s116
      %p123 = scmp.eq.s32.totalorder %s22, 1
      %p124 = por %p122, %p123
      %p125 = scmp.ne.s32.totalorder %s116, %s117
      %p126 = scmp.eq.s32.totalorder %s22, 0
      %p127 = por %p125, %p126
      %p128 = scmp.ne.s32.totalorder %s116, %s117
      %p129 = scmp.eq.s32.totalorder %s23, 1
      %p130 = por %p128, %p129
      %p132 = scmp.ne.s32.totalorder %s117, %s131
      %p133 = scmp.eq.s32.totalorder %s23, 0
      %p134 = por %p132, %p133
      %s136 = sadd.s32 %s135, 1
      %p139 = scmp.eq.s32.totalorder %s17, 1
      %p140 = scmp.ne.s32.totalorder %s135, %s137
      %p141 = scmp.eq.s32.totalorder %s17, 0
      %p142 = por %p140, %p141
      %p143 = scmp.ne.s32.totalorder %s135, %s137
      %p144 = scmp.eq.s32.totalorder %s22, 1
      %p145 = por %p143, %p144
      %p146 = scmp.ne.s32.totalorder %s137, %s138
      %p147 = scmp.eq.s32.totalorder %s22, 0
      %p148 = por %p146, %p147
      %p149 = scmp.ne.s32.totalorder %s137, %s138
      %p150 = scmp.eq.s32.totalorder %s23, 1
      %p151 = por %p149, %p150
      %p153 = scmp.ne.s32.totalorder %s138, %s152
      %p154 = scmp.eq.s32.totalorder %s23, 0
      %p155 = por %p153, %p154
      %s157 = sadd.s32 %s156, 1
      %p160 = scmp.eq.s32.totalorder %s17, 1
      %p161 = scmp.ne.s32.totalorder %s156, %s158
      %p162 = scmp.eq.s32.totalorder %s17, 0
      %p163 = por %p161, %p162
      %p164 = scmp.ne.s32.totalorder %s156, %s158
      %p165 = scmp.eq.s32.totalorder %s22, 1
      %p166 = por %p164, %p165
      %p167 = scmp.ne.s32.totalorder %s158, %s159
      %p168 = scmp.eq.s32.totalorder %s22, 0
      %p169 = por %p167, %p168
      %p170 = scmp.ne.s32.totalorder %s158, %s159
      %p171 = scmp.eq.s32.totalorder %s23, 1
      %p172 = por %p170, %p171
      %p174 = scmp.ne.s32.totalorder %s159, %s173
      %p175 = scmp.eq.s32.totalorder %s23, 0
      %p176 = por %p174, %p175
      %s177 = ssub.s32 %s17, %s24
      %p178 = scmp.eq.s32.totalorder %s177, 0
      %s180 = sadd.s32 %s179, 1
      %s181 = scalar_select %p178, %s179, %s180
      %p184 = pneg %p178
      %p185 = scmp.eq.s32.totalorder %s17, 1
      %p186 = por %p184, %p185
      %p187 = scmp.ne.s32.totalorder %s179, %s182
      %p188 = scmp.eq.s32.totalorder %s17, 0
      %p189 = por %p187, %p188
      %p190 = scmp.ne.s32.totalorder %s179, %s182
      %p191 = scmp.eq.s32.totalorder %s22, 1
      %p192 = por %p190, %p191
      %p193 = scmp.ne.s32.totalorder %s182, %s183
      %p194 = scmp.eq.s32.totalorder %s22, 0
      %p195 = por %p193, %p194
      %p196 = scmp.ne.s32.totalorder %s182, %s183
      %p197 = scmp.eq.s32.totalorder %s23, 1
      %p198 = por %p196, %p197
      %p200 = scmp.ne.s32.totalorder %s183, %s199
      %p201 = scmp.eq.s32.totalorder %s23, 0
      %p202 = por %p200, %p201
      %p203 = scmp.le.s32.totalorder 1, %s17
      %p204 = scmp.lt.s32.totalorder %s17, 3
      %p205 = pnand %p203, %p204
      %p206 = pneg %p205
      // Predicated region
      $region9: #{tpu_custom_call.1} parent=5 // pred_check
        _
      $region10: #{tpu_custom_call.1} parent=5 // pred_check_branch
        %208 = sbr.rel (%p205) target = $region12
      $region11: #{tpu_custom_call.1} parent=5 // pred_region
        %s209 = ssub.s32 %s17, 1
        // Predicated region
        $region13: #{tpu_custom_call.1} parent=11 // pred_check
          %p210 = pneg %p64
        $region14: #{tpu_custom_call.1} parent=11 // pred_check_branch
          %212 = sbr.rel (%p210) target = $region16
        $region15: #{tpu_custom_call.1} parent=11 // pred_region
          _
        $region16: #{tpu_custom_call.1} parent=11 // pred_fallthru
          _
        // Predicated region
        $region17: #{tpu_custom_call.1} parent=11 // pred_check
          %p213 = pneg %p85
        $region18: #{tpu_custom_call.1} parent=11 // pred_check_branch
          %215 = sbr.rel (%p213) target = $region20
        $region19: #{tpu_custom_call.1} parent=11 // pred_region
          _
        $region20: #{tpu_custom_call.1} parent=11 // pred_fallthru
          _
        // Predicated region
        $region21: #{tpu_custom_call.1} parent=11 // pred_check
          %p216 = pneg %p106
        $region22: #{tpu_custom_call.1} parent=11 // pred_check_branch
          %218 = sbr.rel (%p216) target = $region24
        $region23: #{tpu_custom_call.1} parent=11 // pred_region
          _
        $region24: #{tpu_custom_call.1} parent=11 // pred_fallthru
          _
        // Predicated region
        $region25: #{tpu_custom_call.1} parent=11 // pred_check
          %p219 = pneg %p127
        $region26: #{tpu_custom_call.1} parent=11 // pred_check_branch
          %221 = sbr.rel (%p219) target = $region28
        $region27: #{tpu_custom_call.1} parent=11 // pred_region
          _
        $region28: #{tpu_custom_call.1} parent=11 // pred_fallthru
          _
        // Predicated region
        $region29: #{tpu_custom_call.1} parent=11 // pred_check
          %p222 = pneg %p148
        $region30: #{tpu_custom_call.1} parent=11 // pred_check_branch
          %224 = sbr.rel (%p222) target = $region32
        $region31: #{tpu_custom_call.1} parent=11 // pred_region
          %s226 = ssub.s32 6144, 6144
          %227 = vsyncadd [#allocation3], %s226
          %s228 = sshll.u32 [#allocation2], 4
          %s229 = int_to_ptr.vmem [resolvable:$true] %s228
          %234 = dma.hbm_to_vmem [thread:$0]  %s5, 6144, %s229, [#allocation3], 128, 128, 8
        $region32: #{tpu_custom_call.1} parent=11 // pred_fallthru
          _
        // Predicated region
        $region33: #{tpu_custom_call.1} parent=11 // pred_check
          %p235 = pneg %p169
        $region34: #{tpu_custom_call.1} parent=11 // pred_check_branch
          %237 = sbr.rel (%p235) target = $region36
        $region35: #{tpu_custom_call.1} parent=11 // pred_region
          _
        $region36: #{tpu_custom_call.1} parent=11 // pred_fallthru
          _
      $region12: #{tpu_custom_call.1} parent=5 // pred_fallthru
        _
      %p238 = scmp.lt.s32.totalorder %s17, 2
      // Predicated region
      $region37: #{tpu_custom_call.1} parent=5 // pred_check
        %p239 = pneg %p238
      $region38: #{tpu_custom_call.1} parent=5 // pred_check_branch
        %241 = sbr.rel (%p239) target = $region40
      $region39: #{tpu_custom_call.1} parent=5 // pred_region
        // Predicated region
        $region41: #{tpu_custom_call.1} parent=39 // pred_check
          %p242 = pneg %p37
        $region42: #{tpu_custom_call.1} parent=39 // pred_check_branch
          %244 = sbr.rel (%p242) target = $region44
        $region43: #{tpu_custom_call.1} parent=39 // pred_region
          %s245 = smul.u32 8, %s17
          %p246 = scmp.lt.s32.totalorder %s245, 15
          %s247 = scalar_select %p246, %s245, 15
          %s248 = smul.addr %s247, 2
          %s249 = smul.addr %s248, 8
          %s250 = scalar_lea.vmem %s0, %s249
          %s251 = smul.u32 8, %s17
        $region44: #{tpu_custom_call.1} parent=39 // pred_fallthru
          _
      $region40: #{tpu_custom_call.1} parent=5 // pred_fallthru
        _
      %p252 = scmp.le.s32.totalorder 1, %s17
      %p253 = scmp.lt.s32.totalorder %s17, 3
      %p254 = pnand %p252, %p253
      %p255 = pneg %p254
      // Predicated region
      $region45: #{tpu_custom_call.1} parent=5 // pred_check
        _
      $region46: #{tpu_custom_call.1} parent=5 // pred_check_branch
        %257 = sbr.rel (%p254) target = $region48
      $region47: #{tpu_custom_call.1} parent=5 // pred_region
        %s258 = ssub.s32 %s17, 1
        // Predicated region
        $region49: #{tpu_custom_call.1} parent=47 // pred_check
          %p259 = pneg %p148
        $region50: #{tpu_custom_call.1} parent=47 // pred_check_branch
          %261 = sbr.rel (%p259) target = $region52
        $region51: #{tpu_custom_call.1} parent=47 // pred_region
          %262 = dma.done [#allocation3], 6144
        $region52: #{tpu_custom_call.1} parent=47 // pred_fallthru
          _
        %s263 = smul.u32 8, %s22
        %p264 = scmp.lt.s32.totalorder %s263, 15
        %s265 = scalar_select %p264, %s263, 15
        %s266 = smul.addr %s265, 2
        %s267 = smul.addr %s266, 8
        %s268 = scalar_lea.vmem %s0, %s267
        %p269 = pneg %p43
        %p270 = pneg %p40
        %p271 = pneg %p64
        %p272 = pneg %p61
        %p273 = pneg %p85
        %p274 = pneg %p82
        %p275 = pneg %p106
        %p276 = pneg %p103
        %p277 = pneg %p127
        %p278 = pneg %p124
        %p279 = pneg %p148
        %p280 = pneg %p145
        %p281 = pneg %p169
        %p282 = pneg %p166
        %p283 = pneg %p195
        %p284 = pneg %p192
        %s285 = sand.u32 %s182, 1
        %s286 = scalar_lea.sflag [#allocation4], %s285
        %s287 = sand.u32 %s182, 1
        %s288 = smul.addr %s287, 16
        %s289 = scalar_lea.vmem [#allocation5], %s288
        %s290 = smul.u32 8, %s22
        %p291 = scmp.lt.s32.totalorder %s290, 15
        %s292 = scalar_select %p291, %s290, 15
        %s293 = smul.addr %s292, 2
        %s294 = smul.addr %s293, 8
        %s295 = scalar_lea.vmem %s0, %s294
        %s296 = smul.u32 8, %s22
        %v298 = vlaneseq
        %v299 = vshrl.u32 %v298, 7
        %v300 = vadd.s32 %v299, 8
        %v301 = vadd.s32 %v299, 16
        %v302 = vadd.s32 %v299, 24
        %v303 = vadd.s32 %v299, 32
        %v304 = vadd.s32 %v299, 40
        %v305 = vadd.s32 %v299, 48
        %v306 = vadd.s32 %v299, 56
        %v307 = vadd.s32 %v299, 64
        %v308 = vadd.s32 %v299, 72
        %v309 = vadd.s32 %v299, 80
        %v310 = vadd.s32 %v299, 88
        %v311 = vadd.s32 %v299, 96
        %v312 = vadd.s32 %v299, 104
        %v313 = vadd.s32 %v299, 112
        %v314 = vadd.s32 %v299, 120
        %vm315 = vcmp.lt.s32.totalorder %v299, 0
        %v316 = vsub.s32 0, %v299
        %v317 = vsel %vm315, %v316, %v299
        %v318 = vshrl.u32 %v317, 4
        %v319 = vand.u32 %v317, 15
        %v320 = vsub.s32 0, %v319
        %v321 = vsel %vm315, %v320, %v319
        %vm322 = vcmp.lt.s32.totalorder %v300, 0
        %v323 = vsub.s32 0, %v300
        %v324 = vsel %vm322, %v323, %v300
        %v325 = vshrl.u32 %v324, 4
        %v326 = vand.u32 %v324, 15
        %v327 = vsub.s32 0, %v326
        %v328 = vsel %vm322, %v327, %v326
        %vm329 = vcmp.lt.s32.totalorder %v301, 0
        %v330 = vsub.s32 0, %v301
        %v331 = vsel %vm329, %v330, %v301
        %v332 = vshrl.u32 %v331, 4
        %v333 = vand.u32 %v331, 15
        %v334 = vsub.s32 0, %v333
        %v335 = vsel %vm329, %v334, %v333
        %vm336 = vcmp.lt.s32.totalorder %v302, 0
        %v337 = vsub.s32 0, %v302
        %v338 = vsel %vm336, %v337, %v302
        %v339 = vshrl.u32 %v338, 4
        %v340 = vand.u32 %v338, 15
        %v341 = vsub.s32 0, %v340
        %v342 = vsel %vm336, %v341, %v340
        %vm343 = vcmp.lt.s32.totalorder %v303, 0
        %v344 = vsub.s32 0, %v303
        %v345 = vsel %vm343, %v344, %v303
        %v346 = vshrl.u32 %v345, 4
        %v347 = vand.u32 %v345, 15
        %v348 = vsub.s32 0, %v347
        %v349 = vsel %vm343, %v348, %v347
        %vm350 = vcmp.lt.s32.totalorder %v304, 0
        %v351 = vsub.s32 0, %v304
        %v352 = vsel %vm350, %v351, %v304
        %v353 = vshrl.u32 %v352, 4
        %v354 = vand.u32 %v352, 15
        %v355 = vsub.s32 0, %v354
        %v356 = vsel %vm350, %v355, %v354
        %vm357 = vcmp.lt.s32.totalorder %v305, 0
        %v358 = vsub.s32 0, %v305
        %v359 = vsel %vm357, %v358, %v305
        %v360 = vshrl.u32 %v359, 4
        %v361 = vand.u32 %v359, 15
        %v362 = vsub.s32 0, %v361
        %v363 = vsel %vm357, %v362, %v361
        %vm364 = vcmp.lt.s32.totalorder %v306, 0
        %v365 = vsub.s32 0, %v306
        %v366 = vsel %vm364, %v365, %v306
        %v367 = vshrl.u32 %v366, 4
        %v368 = vand.u32 %v366, 15
        %v369 = vsub.s32 0, %v368
        %v370 = vsel %vm364, %v369, %v368
        %vm371 = vcmp.lt.s32.totalorder %v307, 0
        %v372 = vsub.s32 0, %v307
        %v373 = vsel %vm371, %v372, %v307
        %v374 = vshrl.u32 %v373, 4
        %v375 = vand.u32 %v373, 15
        %v376 = vsub.s32 0, %v375
        %v377 = vsel %vm371, %v376, %v375
        %vm378 = vcmp.lt.s32.totalorder %v308, 0
        %v379 = vsub.s32 0, %v308
        %v380 = vsel %vm378, %v379, %v308
        %v381 = vshrl.u32 %v380, 4
        %v382 = vand.u32 %v380, 15
        %v383 = vsub.s32 0, %v382
        %v384 = vsel %vm378, %v383, %v382
        %vm385 = vcmp.lt.s32.totalorder %v309, 0
        %v386 = vsub.s32 0, %v309
        %v387 = vsel %vm385, %v386, %v309
        %v388 = vshrl.u32 %v387, 4
        %v389 = vand.u32 %v387, 15
        %v390 = vsub.s32 0, %v389
        %v391 = vsel %vm385, %v390, %v389
        %vm392 = vcmp.lt.s32.totalorder %v310, 0
        %v393 = vsub.s32 0, %v310
        %v394 = vsel %vm392, %v393, %v310
        %v395 = vshrl.u32 %v394, 4
        %v396 = vand.u32 %v394, 15
        %v397 = vsub.s32 0, %v396
        %v398 = vsel %vm392, %v397, %v396
        %vm399 = vcmp.lt.s32.totalorder %v311, 0
        %v400 = vsub.s32 0, %v311
        %v401 = vsel %vm399, %v400, %v311
        %v402 = vshrl.u32 %v401, 4
        %v403 = vand.u32 %v401, 15
        %v404 = vsub.s32 0, %v403
        %v405 = vsel %vm399, %v404, %v403
        %vm406 = vcmp.lt.s32.totalorder %v312, 0
        %v407 = vsub.s32 0, %v312
        %v408 = vsel %vm406, %v407, %v312
        %v409 = vshrl.u32 %v408, 4
        %v410 = vand.u32 %v408, 15
        %v411 = vsub.s32 0, %v410
        %v412 = vsel %vm406, %v411, %v410
        %vm413 = vcmp.lt.s32.totalorder %v313, 0
        %v414 = vsub.s32 0, %v313
        %v415 = vsel %vm413, %v414, %v313
        %v416 = vshrl.u32 %v415, 4
        %v417 = vand.u32 %v415, 15
        %v418 = vsub.s32 0, %v417
        %v419 = vsel %vm413, %v418, %v417
        %vm420 = vcmp.lt.s32.totalorder %v314, 0
        %v421 = vsub.s32 0, %v314
        %v422 = vsel %vm420, %v421, %v314
        %v423 = vshrl.u32 %v422, 4
        %v424 = vand.u32 %v422, 15
        %v425 = vsub.s32 0, %v424
        %v426 = vsel %vm420, %v425, %v424
        %vm427 = vcmp.ne.s32.totalorder %v321, 0
        %vm428 = vcmp.ne.s32.totalorder %v328, 0
        %vm429 = vcmp.ne.s32.totalorder %v335, 0
        %vm430 = vcmp.ne.s32.totalorder %v342, 0
        %vm431 = vcmp.ne.s32.totalorder %v349, 0
        %vm432 = vcmp.ne.s32.totalorder %v356, 0
        %vm433 = vcmp.ne.s32.totalorder %v363, 0
        %vm434 = vcmp.ne.s32.totalorder %v370, 0
        %vm435 = vcmp.ne.s32.totalorder %v377, 0
        %vm436 = vcmp.ne.s32.totalorder %v384, 0
        %vm437 = vcmp.ne.s32.totalorder %v391, 0
        %vm438 = vcmp.ne.s32.totalorder %v398, 0
        %vm439 = vcmp.ne.s32.totalorder %v405, 0
        %vm440 = vcmp.ne.s32.totalorder %v412, 0
        %vm441 = vcmp.ne.s32.totalorder %v419, 0
        %vm442 = vcmp.ne.s32.totalorder %v426, 0
        %vm443 = vcmp.lt.s32.totalorder %v321, 0
        %vm444 = vcmp.lt.s32.totalorder %v328, 0
        %vm445 = vcmp.lt.s32.totalorder %v335, 0
        %vm446 = vcmp.lt.s32.totalorder %v342, 0
        %vm447 = vcmp.lt.s32.totalorder %v349, 0
        %vm448 = vcmp.lt.s32.totalorder %v356, 0
        %vm449 = vcmp.lt.s32.totalorder %v363, 0
        %vm450 = vcmp.lt.s32.totalorder %v370, 0
        %vm451 = vcmp.lt.s32.totalorder %v377, 0
        %vm452 = vcmp.lt.s32.totalorder %v384, 0
        %vm453 = vcmp.lt.s32.totalorder %v391, 0
        %vm454 = vcmp.lt.s32.totalorder %v398, 0
        %vm455 = vcmp.lt.s32.totalorder %v405, 0
        %vm456 = vcmp.lt.s32.totalorder %v412, 0
        %vm457 = vcmp.lt.s32.totalorder %v419, 0
        %vm458 = vcmp.lt.s32.totalorder %v426, 0
        %vm459 = vmand %vm443, %vm427
        %vm460 = vmand %vm444, %vm428
        %vm461 = vmand %vm445, %vm429
        %vm462 = vmand %vm446, %vm430
        %vm463 = vmand %vm447, %vm431
        %vm464 = vmand %vm448, %vm432
        %vm465 = vmand %vm449, %vm433
        %vm466 = vmand %vm450, %vm434
        %vm467 = vmand %vm451, %vm435
        %vm468 = vmand %vm452, %vm436
        %vm469 = vmand %vm453, %vm437
        %vm470 = vmand %vm454, %vm438
        %vm471 = vmand %vm455, %vm439
        %vm472 = vmand %vm456, %vm440
        %vm473 = vmand %vm457, %vm441
        %vm474 = vmand %vm458, %vm442
        %v475 = vadd.s32 %v321, 16
        %v476 = vadd.s32 %v328, 16
        %v477 = vadd.s32 %v335, 16
        %v478 = vadd.s32 %v342, 16
        %v479 = vadd.s32 %v349, 16
        %v480 = vadd.s32 %v356, 16
        %v481 = vadd.s32 %v363, 16
        %v482 = vadd.s32 %v370, 16
        %v483 = vadd.s32 %v377, 16
        %v484 = vadd.s32 %v384, 16
        %v485 = vadd.s32 %v391, 16
        %v486 = vadd.s32 %v398, 16
        %v487 = vadd.s32 %v405, 16
        %v488 = vadd.s32 %v412, 16
        %v489 = vadd.s32 %v419, 16
        %v490 = vadd.s32 %v426, 16
        %v491 = vsel %vm459, %v475, %v321
        %v492 = vsel %vm460, %v476, %v328
        %v493 = vsel %vm461, %v477, %v335
        %v494 = vsel %vm462, %v478, %v342
        %v495 = vsel %vm463, %v479, %v349
        %v496 = vsel %vm464, %v480, %v356
        %v497 = vsel %vm465, %v481, %v363
        %v498 = vsel %vm466, %v482, %v370
        %v499 = vsel %vm467, %v483, %v377
        %v500 = vsel %vm468, %v484, %v384
        %v501 = vsel %vm469, %v485, %v391
        %v502 = vsel %vm470, %v486, %v398
        %v503 = vsel %vm471, %v487, %v405
        %v504 = vsel %vm472, %v488, %v412
        %v505 = vsel %vm473, %v489, %v419
        %v506 = vsel %vm474, %v490, %v426
        %vm507 = vcmp.eq.s32.totalorder %v491, 0
        %vm508 = vcmp.eq.s32.totalorder %v492, 0
        %vm509 = vcmp.eq.s32.totalorder %v493, 0
        %vm510 = vcmp.eq.s32.totalorder %v494, 0
        %vm511 = vcmp.eq.s32.totalorder %v495, 0
        %vm512 = vcmp.eq.s32.totalorder %v496, 0
        %vm513 = vcmp.eq.s32.totalorder %v497, 0
        %vm514 = vcmp.eq.s32.totalorder %v498, 0
        %vm515 = vcmp.eq.s32.totalorder %v499, 0
        %vm516 = vcmp.eq.s32.totalorder %v500, 0
        %vm517 = vcmp.eq.s32.totalorder %v501, 0
        %vm518 = vcmp.eq.s32.totalorder %v502, 0
        %vm519 = vcmp.eq.s32.totalorder %v503, 0
        %vm520 = vcmp.eq.s32.totalorder %v504, 0
        %vm521 = vcmp.eq.s32.totalorder %v505, 0
        %vm522 = vcmp.eq.s32.totalorder %v506, 0
        %vm523 = vcmp.eq.s32.totalorder %v491, 15
        %vm524 = vcmp.eq.s32.totalorder %v492, 15
        %vm525 = vcmp.eq.s32.totalorder %v493, 15
        %vm526 = vcmp.eq.s32.totalorder %v494, 15
        %vm527 = vcmp.eq.s32.totalorder %v495, 15
        %vm528 = vcmp.eq.s32.totalorder %v496, 15
        %vm529 = vcmp.eq.s32.totalorder %v497, 15
        %vm530 = vcmp.eq.s32.totalorder %v498, 15
        %vm531 = vcmp.eq.s32.totalorder %v499, 15
        %vm532 = vcmp.eq.s32.totalorder %v500, 15
        %vm533 = vcmp.eq.s32.totalorder %v501, 15
        %vm534 = vcmp.eq.s32.totalorder %v502, 15
        %vm535 = vcmp.eq.s32.totalorder %v503, 15
        %vm536 = vcmp.eq.s32.totalorder %v504, 15
        %vm537 = vcmp.eq.s32.totalorder %v505, 15
        %vm538 = vcmp.eq.s32.totalorder %v506, 15
        %v539 = vld [vmem:[%s295] sm:$0xff]
        %v540 = vld [vmem:[%s295 + $0x8] sm:$0xff]
        %v541 = vld [vmem:[%s295 + $0x10] sm:$0xff]
        %v542 = vld [vmem:[%s295 + $0x18] sm:$0xff]
        %v543 = vld [vmem:[%s295 + $0x20] sm:$0xff]
        %v544 = vld [vmem:[%s295 + $0x28] sm:$0xff]
        %v545 = vld [vmem:[%s295 + $0x30] sm:$0xff]
        %v546 = vld [vmem:[%s295 + $0x38] sm:$0xff]
        %v547 = vld [vmem:[%s295 + $0x40] sm:$0xff]
        %v548 = vld [vmem:[%s295 + $0x48] sm:$0xff]
        %v549 = vld [vmem:[%s295 + $0x50] sm:$0xff]
        %v550 = vld [vmem:[%s295 + $0x58] sm:$0xff]
        %v551 = vld [vmem:[%s295 + $0x60] sm:$0xff]
        %v552 = vld [vmem:[%s295 + $0x68] sm:$0xff]
        %v553 = vld [vmem:[%s295 + $0x70] sm:$0xff]
        %v554 = vld [vmem:[%s295 + $0x78] sm:$0xff]
        %vm571 = vcmask 1040384
        %v572 = vrot.slane %v539, 7
        %v573 = vrot.slane %v540, 7
        %v574 = vsel %vm571, %v572, %v573
        %v575 = vrot.slane %v541, 7
        %v576 = vsel %vm571, %v573, %v575
        %v577 = vrot.slane %v542, 7
        %v578 = vsel %vm571, %v575, %v577
        %v579 = vrot.slane %v543, 7
        %v580 = vsel %vm571, %v577, %v579
        %v581 = vrot.slane %v544, 7
        %v582 = vsel %vm571, %v579, %v581
        %v583 = vrot.slane %v545, 7
        %v584 = vsel %vm571, %v581, %v583
        %v585 = vrot.slane %v546, 7
        %v586 = vsel %vm571, %v583, %v585
        %v587 = vrot.slane %v547, 7
        %v588 = vsel %vm571, %v585, %v587
        %v589 = vrot.slane %v548, 7
        %v590 = vsel %vm571, %v587, %v589
        %v591 = vrot.slane %v549, 7
        %v592 = vsel %vm571, %v589, %v591
        %v593 = vrot.slane %v550, 7
        %v594 = vsel %vm571, %v591, %v593
        %v595 = vrot.slane %v551, 7
        %v596 = vsel %vm571, %v593, %v595
        %v597 = vrot.slane %v552, 7
        %v598 = vsel %vm571, %v595, %v597
        %v599 = vrot.slane %v553, 7
        %v600 = vsel %vm571, %v597, %v599
        %v601 = vrot.slane %v554, 7
        %v602 = vsel %vm571, %v599, %v601
        %v619 = vsel %vm571, 0.0, %v572
        %v620 = vsel %vm507, 1, 0
        %v621 = vsel %vm508, 1, 0
        %v622 = vsel %vm509, 1, 0
        %v623 = vsel %vm510, 1, 0
        %v624 = vsel %vm511, 1, 0
        %v625 = vsel %vm512, 1, 0
        %v626 = vsel %vm513, 1, 0
        %v627 = vsel %vm514, 1, 0
        %v628 = vsel %vm515, 1, 0
        %v629 = vsel %vm516, 1, 0
        %v630 = vsel %vm517, 1, 0
        %v631 = vsel %vm518, 1, 0
        %v632 = vsel %vm519, 1, 0
        %v633 = vsel %vm520, 1, 0
        %v634 = vsel %vm521, 1, 0
        %v635 = vsel %vm522, 1, 0
        %vm636 = vcmp.eq.s32.totalorder %v620, 1
        %vm637 = vcmp.eq.s32.totalorder %v621, 1
        %vm638 = vcmp.eq.s32.totalorder %v622, 1
        %vm639 = vcmp.eq.s32.totalorder %v623, 1
        %vm640 = vcmp.eq.s32.totalorder %v624, 1
        %vm641 = vcmp.eq.s32.totalorder %v625, 1
        %vm642 = vcmp.eq.s32.totalorder %v626, 1
        %vm643 = vcmp.eq.s32.totalorder %v627, 1
        %vm644 = vcmp.eq.s32.totalorder %v628, 1
        %vm645 = vcmp.eq.s32.totalorder %v629, 1
        %vm646 = vcmp.eq.s32.totalorder %v630, 1
        %vm647 = vcmp.eq.s32.totalorder %v631, 1
        %vm648 = vcmp.eq.s32.totalorder %v632, 1
        %vm649 = vcmp.eq.s32.totalorder %v633, 1
        %vm650 = vcmp.eq.s32.totalorder %v634, 1
        %vm651 = vcmp.eq.s32.totalorder %v635, 1
        %v652 = vsel %vm636, 0.0, %v619
        %v653 = vsel %vm637, 0.0, %v574
        %v654 = vsel %vm638, 0.0, %v576
        %v655 = vsel %vm639, 0.0, %v578
        %v656 = vsel %vm640, 0.0, %v580
        %v657 = vsel %vm641, 0.0, %v582
        %v658 = vsel %vm642, 0.0, %v584
        %v659 = vsel %vm643, 0.0, %v586
        %v660 = vsel %vm644, 0.0, %v588
        %v661 = vsel %vm645, 0.0, %v590
        %v662 = vsel %vm646, 0.0, %v592
        %v663 = vsel %vm647, 0.0, %v594
        %v664 = vsel %vm648, 0.0, %v596
        %v665 = vsel %vm649, 0.0, %v598
        %v666 = vsel %vm650, 0.0, %v600
        %v667 = vsel %vm651, 0.0, %v602
        %vm668 = vcmask 1046528
        %v669 = vrot.slane %v539, 1
        %v670 = vrot.slane %v540, 1
        %v671 = vsel %vm668, %v669, %v670
        %v672 = vrot.slane %v541, 1
        %v673 = vsel %vm668, %v670, %v672
        %v674 = vrot.slane %v542, 1
        %v675 = vsel %vm668, %v672, %v674
        %v676 = vrot.slane %v543, 1
        %v677 = vsel %vm668, %v674, %v676
        %v678 = vrot.slane %v544, 1
        %v679 = vsel %vm668, %v676, %v678
        %v680 = vrot.slane %v545, 1
        %v681 = vsel %vm668, %v678, %v680
        %v682 = vrot.slane %v546, 1
        %v683 = vsel %vm668, %v680, %v682
        %v684 = vrot.slane %v547, 1
        %v685 = vsel %vm668, %v682, %v684
        %v686 = vrot.slane %v548, 1
        %v687 = vsel %vm668, %v684, %v686
        %v688 = vrot.slane %v549, 1
        %v689 = vsel %vm668, %v686, %v688
        %v690 = vrot.slane %v550, 1
        %v691 = vsel %vm668, %v688, %v690
        %v692 = vrot.slane %v551, 1
        %v693 = vsel %vm668, %v690, %v692
        %v694 = vrot.slane %v552, 1
        %v695 = vsel %vm668, %v692, %v694
        %v696 = vrot.slane %v553, 1
        %v697 = vsel %vm668, %v694, %v696
        %v698 = vrot.slane %v554, 1
        %v699 = vsel %vm668, %v696, %v698
        %v716 = vsel %vm668, %v698, 0.0
        %v717 = vsel %vm523, 1, 0
        %v718 = vsel %vm524, 1, 0
        %v719 = vsel %vm525, 1, 0
        %v720 = vsel %vm526, 1, 0
        %v721 = vsel %vm527, 1, 0
        %v722 = vsel %vm528, 1, 0
        %v723 = vsel %vm529, 1, 0
        %v724 = vsel %vm530, 1, 0
        %v725 = vsel %vm531, 1, 0
        %v726 = vsel %vm532, 1, 0
        %v727 = vsel %vm533, 1, 0
        %v728 = vsel %vm534, 1, 0
        %v729 = vsel %vm535, 1, 0
        %v730 = vsel %vm536, 1, 0
        %v731 = vsel %vm537, 1, 0
        %v732 = vsel %vm538, 1, 0
        %vm733 = vcmp.eq.s32.totalorder %v717, 1
        %vm734 = vcmp.eq.s32.totalorder %v718, 1
        %vm735 = vcmp.eq.s32.totalorder %v719, 1
        %vm736 = vcmp.eq.s32.totalorder %v720, 1
        %vm737 = vcmp.eq.s32.totalorder %v721, 1
        %vm738 = vcmp.eq.s32.totalorder %v722, 1
        %vm739 = vcmp.eq.s32.totalorder %v723, 1
        %vm740 = vcmp.eq.s32.totalorder %v724, 1
        %vm741 = vcmp.eq.s32.totalorder %v725, 1
        %vm742 = vcmp.eq.s32.totalorder %v726, 1
        %vm743 = vcmp.eq.s32.totalorder %v727, 1
        %vm744 = vcmp.eq.s32.totalorder %v728, 1
        %vm745 = vcmp.eq.s32.totalorder %v729, 1
        %vm746 = vcmp.eq.s32.totalorder %v730, 1
        %vm747 = vcmp.eq.s32.totalorder %v731, 1
        %vm748 = vcmp.eq.s32.totalorder %v732, 1
        %v749 = vsel %vm733, 0.0, %v671
        %v750 = vsel %vm734, 0.0, %v673
        %v751 = vsel %vm735, 0.0, %v675
        %v752 = vsel %vm736, 0.0, %v677
        %v753 = vsel %vm737, 0.0, %v679
        %v754 = vsel %vm738, 0.0, %v681
        %v755 = vsel %vm739, 0.0, %v683
        %v756 = vsel %vm740, 0.0, %v685
        %v757 = vsel %vm741, 0.0, %v687
        %v758 = vsel %vm742, 0.0, %v689
        %v759 = vsel %vm743, 0.0, %v691
        %v760 = vsel %vm744, 0.0, %v693
        %v761 = vsel %vm745, 0.0, %v695
        %v762 = vsel %vm746, 0.0, %v697
        %v763 = vsel %vm747, 0.0, %v699
        %v764 = vsel %vm748, 0.0, %v716
        %765 = vrot.lane.b32.xlu0 %v539, 4
        %v766 = vpop.permute.xlu0 %765
        %767 = vrot.lane.b32.xlu0 %v540, 4
        %v768 = vpop.permute.xlu0 %767
        %769 = vrot.lane.b32.xlu0 %v541, 4
        %v770 = vpop.permute.xlu0 %769
        %771 = vrot.lane.b32.xlu0 %v542, 4
        %v772 = vpop.permute.xlu0 %771
        %773 = vrot.lane.b32.xlu0 %v543, 4
        %v774 = vpop.permute.xlu0 %773
        %775 = vrot.lane.b32.xlu0 %v544, 4
        %v776 = vpop.permute.xlu0 %775
        %777 = vrot.lane.b32.xlu0 %v545, 4
        %v778 = vpop.permute.xlu0 %777
        %779 = vrot.lane.b32.xlu0 %v546, 4
        %v780 = vpop.permute.xlu0 %779
        %781 = vrot.lane.b32.xlu0 %v547, 4
        %v782 = vpop.permute.xlu0 %781
        %783 = vrot.lane.b32.xlu0 %v548, 4
        %v784 = vpop.permute.xlu0 %783
        %785 = vrot.lane.b32.xlu0 %v549, 4
        %v786 = vpop.permute.xlu0 %785
        %787 = vrot.lane.b32.xlu0 %v550, 4
        %v788 = vpop.permute.xlu0 %787
        %789 = vrot.lane.b32.xlu0 %v551, 4
        %v790 = vpop.permute.xlu0 %789
        %791 = vrot.lane.b32.xlu0 %v552, 4
        %v792 = vpop.permute.xlu0 %791
        %793 = vrot.lane.b32.xlu0 %v553, 4
        %v794 = vpop.permute.xlu0 %793
        %795 = vrot.lane.b32.xlu0 %v554, 4
        %v796 = vpop.permute.xlu0 %795
        %829 = vrot.lane.b32.xlu0 %v749, 8
        %v830 = vpop.permute.xlu0 %829
        %831 = vrot.lane.b32.xlu0 %v750, 8
        %v832 = vpop.permute.xlu0 %831
        %833 = vrot.lane.b32.xlu0 %v751, 8
        %v834 = vpop.permute.xlu0 %833
        %835 = vrot.lane.b32.xlu0 %v752, 8
        %v836 = vpop.permute.xlu0 %835
        %837 = vrot.lane.b32.xlu0 %v753, 8
        %v838 = vpop.permute.xlu0 %837
        %839 = vrot.lane.b32.xlu0 %v754, 8
        %v840 = vpop.permute.xlu0 %839
        %841 = vrot.lane.b32.xlu0 %v755, 8
        %v842 = vpop.permute.xlu0 %841
        %843 = vrot.lane.b32.xlu0 %v756, 8
        %v844 = vpop.permute.xlu0 %843
        %845 = vrot.lane.b32.xlu0 %v757, 8
        %v846 = vpop.permute.xlu0 %845
        %847 = vrot.lane.b32.xlu0 %v758, 8
        %v848 = vpop.permute.xlu0 %847
        %849 = vrot.lane.b32.xlu0 %v759, 8
        %v850 = vpop.permute.xlu0 %849
        %851 = vrot.lane.b32.xlu0 %v760, 8
        %v852 = vpop.permute.xlu0 %851
        %853 = vrot.lane.b32.xlu0 %v761, 8
        %v854 = vpop.permute.xlu0 %853
        %855 = vrot.lane.b32.xlu0 %v762, 8
        %v856 = vpop.permute.xlu0 %855
        %857 = vrot.lane.b32.xlu0 %v763, 8
        %v858 = vpop.permute.xlu0 %857
        %859 = vrot.lane.b32.xlu0 %v764, 8
        %v860 = vpop.permute.xlu0 %859
        %vm877 = vcmask 31744
        %v878 = vsel %vm877, %v652, %v766
        %v879 = vsel %vm877, %v653, %v768
        %v880 = vsel %vm877, %v654, %v770
        %v881 = vsel %vm877, %v655, %v772
        %v882 = vsel %vm877, %v656, %v774
        %v883 = vsel %vm877, %v657, %v776
        %v884 = vsel %vm877, %v658, %v778
        %v885 = vsel %vm877, %v659, %v780
        %v886 = vsel %vm877, %v660, %v782
        %v887 = vsel %vm877, %v661, %v784
        %v888 = vsel %vm877, %v662, %v786
        %v889 = vsel %vm877, %v663, %v788
        %v890 = vsel %vm877, %v664, %v790
        %v891 = vsel %vm877, %v665, %v792
        %v892 = vsel %vm877, %v666, %v794
        %v893 = vsel %vm877, %v667, %v796
        %vm894 = vcmask 64512
        %v895 = vsel %vm894, %v878, %v830
        %v896 = vsel %vm894, %v879, %v832
        %v897 = vsel %vm894, %v880, %v834
        %v898 = vsel %vm894, %v881, %v836
        %v899 = vsel %vm894, %v882, %v838
        %v900 = vsel %vm894, %v883, %v840
        %v901 = vsel %vm894, %v884, %v842
        %v902 = vsel %vm894, %v885, %v844
        %v903 = vsel %vm894, %v886, %v846
        %v904 = vsel %vm894, %v887, %v848
        %v905 = vsel %vm894, %v888, %v850
        %v906 = vsel %vm894, %v889, %v852
        %v907 = vsel %vm894, %v890, %v854
        %v908 = vsel %vm894, %v891, %v856
        %v909 = vsel %vm894, %v892, %v858
        %v910 = vsel %vm894, %v893, %v860
        %v911 = vpack.c.bf16 %v896, %v895
        %v912 = vpack.c.bf16 %v898, %v897
        %v913 = vpack.c.bf16 %v900, %v899
        %v914 = vpack.c.bf16 %v902, %v901
        %v915 = vpack.c.bf16 %v904, %v903
        %v916 = vpack.c.bf16 %v906, %v905
        %v917 = vpack.c.bf16 %v908, %v907
        %v918 = vpack.c.bf16 %v910, %v909
        %v919 = vld [vmem:[%s1] sm:$0xf]
        %v920 = vld [vmem:[%s1 + $0x4] sm:$0x3]
        %v921 = vld [vmem:[%s2] sm:$0x1]
        %v923 = vlaneseq
        %v924 = vshrl.u32 %v923, 7
        %v925 = vsub.s32 0, %v924
        %v926 = vrot.slane %v921, %v925
        %v930 = vunpack.c.l.b16 %v919
        %v931 = vunpack.c.l.b16 %v920
        %v932 = vpack.c.b16 %v931, %v930
        %vm933 = vcmask 97280
        %v935 = vsel %vm933, %v911, 0
        %v938 = vsel %vm933, %v912, 0
        %v941 = vsel %vm933, %v913, 0
        %v944 = vsel %vm933, %v914, 0
        %v947 = vsel %vm933, %v915, 0
        %v950 = vsel %vm933, %v916, 0
        %v953 = vsel %vm933, %v917, 0
        %v956 = vsel %vm933, %v918, 0
        %vm958 = vcmask 1045504
        %v960 = vsel %vm958, %v932, 0
        %962 = vmatprep.subr.bf16.mxu0 0
        %963 = vmatpush1.bf16.msra.mxu0 %v960
        %964 = vmatprep.subr.bf16.mxu0 0
        %965 = vmatpush1.bf16.msra.mxu0 0
        %966 = vmatprep.subr.bf16.mxu0 0
        %967 = vmatpush1.bf16.msra.mxu0 0
        %968 = vmatprep.subr.bf16.mxu0 0
        %969 = vmatpush1.bf16.msra.mxu0 0
        %970 = vmatprep.subr.bf16.mxu0 0
        %971 = vmatpush1.bf16.msra.mxu0 0
        %972 = vmatprep.subr.bf16.mxu0 0
        %973 = vmatpush1.bf16.msra.mxu0 0
        %974 = vmatprep.subr.bf16.mxu0 0
        %975 = vmatpush1.bf16.msra.mxu0 0
        %976 = vmatprep.subr.bf16.mxu0 0
        %977 = vmatpush1.bf16.msra.mxu0 0
        %978 = vmatprep.subr.bf16.mxu0 0
        %979 = vmatpush1.bf16.msra.mxu0 0
        %980 = vmatprep.subr.bf16.mxu0 0
        %981 = vmatpush1.bf16.msra.mxu0 0
        %982 = vmatprep.subr.bf16.mxu0 0
        %983 = vmatpush1.bf16.msra.mxu0 0
        %984 = vmatprep.subr.bf16.mxu0 0
        %985 = vmatpush1.bf16.msra.mxu0 0
        %986 = vmatprep.subr.bf16.mxu0 0
        %987 = vmatpush1.bf16.msra.mxu0 0
        %988 = vmatprep.subr.bf16.mxu0 0
        %989 = vmatpush1.bf16.msra.mxu0 0
        %990 = vmatprep.subr.bf16.mxu0 0
        %991 = vmatpush1.bf16.msra.mxu0 0
        %992 = vmatprep.subr.bf16.mxu0 0
        %993 = vmatpush1.bf16.msra.mxu0 0
        %994 = vmatprep.mubr.bf16.mxu0 0
        %995 = vmatmul.mubr.bf16.gmra.mrb[0].mxu0 %v935
        %v996 = vpop.f32.mrb[0].mxu0
        %v997 = vadd.f32 %v926, %v996
        %v998 = vpop.f32.mrb[0].mxu0
        %v999 = vpop.f32.mrb[0].mxu0
        %v1000 = vadd.f32 %v926, %v999
        %v1001 = vpop.f32.mrb[0].mxu0
        %1002 = vmatprep.mubr.bf16.mxu0 0
        %1003 = vmatmul.mubr.bf16.gmra.mrb[0].mxu0 %v938
        %v1004 = vpop.f32.mrb[0].mxu0
        %v1005 = vadd.f32 %v926, %v1004
        %v1006 = vpop.f32.mrb[0].mxu0
        %v1007 = vpop.f32.mrb[0].mxu0
        %v1008 = vadd.f32 %v926, %v1007
        %v1009 = vpop.f32.mrb[0].mxu0
        %1010 = vmatprep.mubr.bf16.mxu0 0
        %1011 = vmatmul.mubr.bf16.gmra.mrb[0].mxu0 %v941
        %v1012 = vpop.f32.mrb[0].mxu0
        %v1013 = vadd.f32 %v926, %v1012
        %v1014 = vpop.f32.mrb[0].mxu0
        %v1015 = vpop.f32.mrb[0].mxu0
        %v1016 = vadd.f32 %v926, %v1015
        %v1017 = vpop.f32.mrb[0].mxu0
        %1018 = vmatprep.mubr.bf16.mxu0 0
        %1019 = vmatmul.mubr.bf16.gmra.mrb[0].mxu0 %v944
        %v1020 = vpop.f32.mrb[0].mxu0
        %v1021 = vadd.f32 %v926, %v1020
        %v1022 = vpop.f32.mrb[0].mxu0
        %v1023 = vpop.f32.mrb[0].mxu0
        %v1024 = vadd.f32 %v926, %v1023
        %v1025 = vpop.f32.mrb[0].mxu0
        %1026 = vmatprep.mubr.bf16.mxu0 0
        %1027 = vmatmul.mubr.bf16.gmra.mrb[0].mxu0 %v947
        %v1028 = vpop.f32.mrb[0].mxu0
        %v1029 = vadd.f32 %v926, %v1028
        %v1030 = vpop.f32.mrb[0].mxu0
        %v1031 = vpop.f32.mrb[0].mxu0
        %v1032 = vadd.f32 %v926, %v1031
        %v1033 = vpop.f32.mrb[0].mxu0
        %1034 = vmatprep.mubr.bf16.mxu0 0
        %1035 = vmatmul.mubr.bf16.gmra.mrb[0].mxu0 %v950
        %v1036 = vpop.f32.mrb[0].mxu0
        %v1037 = vadd.f32 %v926, %v1036
        %v1038 = vpop.f32.mrb[0].mxu0
        %v1039 = vpop.f32.mrb[0].mxu0
        %v1040 = vadd.f32 %v926, %v1039
        %v1041 = vpop.f32.mrb[0].mxu0
        %1042 = vmatprep.mubr.bf16.mxu0 0
        %1043 = vmatmul.mubr.bf16.gmra.mrb[0].mxu0 %v953
        %v1044 = vpop.f32.mrb[0].mxu0
        %v1045 = vadd.f32 %v926, %v1044
        %v1046 = vpop.f32.mrb[0].mxu0
        %v1047 = vpop.f32.mrb[0].mxu0
        %v1048 = vadd.f32 %v926, %v1047
        %v1049 = vpop.f32.mrb[0].mxu0
        %1050 = vmatprep.mubr.bf16.mxu0 0
        %1051 = vmatmul.mubr.bf16.gmra.mrb[0].mxu0 %v956
        %v1052 = vpop.f32.mrb[0].mxu0
        %v1053 = vadd.f32 %v926, %v1052
        %v1054 = vpop.f32.mrb[0].mxu0
        %v1055 = vpop.f32.mrb[0].mxu0
        %v1056 = vadd.f32 %v926, %v1055
        %v1057 = vpop.f32.mrb[0].mxu0
        %1058 = vdwg.mxu0
        %v1059 = vmax.f32 %v997, 0.0
        %v1060 = vmax.f32 %v1000, 0.0
        %v1061 = vmax.f32 %v1005, 0.0
        %v1062 = vmax.f32 %v1008, 0.0
        %v1063 = vmax.f32 %v1013, 0.0
        %v1064 = vmax.f32 %v1016, 0.0
        %v1065 = vmax.f32 %v1021, 0.0
        %v1066 = vmax.f32 %v1024, 0.0
        %v1067 = vmax.f32 %v1029, 0.0
        %v1068 = vmax.f32 %v1032, 0.0
        %v1069 = vmax.f32 %v1037, 0.0
        %v1070 = vmax.f32 %v1040, 0.0
        %v1071 = vmax.f32 %v1045, 0.0
        %v1072 = vmax.f32 %v1048, 0.0
        %v1073 = vmax.f32 %v1053, 0.0
        %v1074 = vmax.f32 %v1056, 0.0
        %v1091 = vrot.slane %v1059, 7
        %v1092 = vrot.slane %v1060, 7
        %v1093 = vsel %vm571, %v1091, %v1092
        %v1094 = vrot.slane %v1061, 7
        %v1095 = vsel %vm571, %v1092, %v1094
        %v1096 = vrot.slane %v1062, 7
        %v1097 = vsel %vm571, %v1094, %v1096
        %v1098 = vrot.slane %v1063, 7
        %v1099 = vsel %vm571, %v1096, %v1098
        %v1100 = vrot.slane %v1064, 7
        %v1101 = vsel %vm571, %v1098, %v1100
        %v1102 = vrot.slane %v1065, 7
        %v1103 = vsel %vm571, %v1100, %v1102
        %v1104 = vrot.slane %v1066, 7
        %v1105 = vsel %vm571, %v1102, %v1104
        %v1106 = vrot.slane %v1067, 7
        %v1107 = vsel %vm571, %v1104, %v1106
        %v1108 = vrot.slane %v1068, 7
        %v1109 = vsel %vm571, %v1106, %v1108
        %v1110 = vrot.slane %v1069, 7
        %v1111 = vsel %vm571, %v1108, %v1110
        %v1112 = vrot.slane %v1070, 7
        %v1113 = vsel %vm571, %v1110, %v1112
        %v1114 = vrot.slane %v1071, 7
        %v1115 = vsel %vm571, %v1112, %v1114
        %v1116 = vrot.slane %v1072, 7
        %v1117 = vsel %vm571, %v1114, %v1116
        %v1118 = vrot.slane %v1073, 7
        %v1119 = vsel %vm571, %v1116, %v1118
        %v1120 = vrot.slane %v1074, 7
        %v1121 = vsel %vm571, %v1118, %v1120
        %v1138 = vsel %vm571, 0.0, %v1091
        %v1139 = vsel %vm636, 0.0, %v1138
        %v1140 = vsel %vm637, 0.0, %v1093
        %v1141 = vsel %vm638, 0.0, %v1095
        %v1142 = vsel %vm639, 0.0, %v1097
        %v1143 = vsel %vm640, 0.0, %v1099
        %v1144 = vsel %vm641, 0.0, %v1101
        %v1145 = vsel %vm642, 0.0, %v1103
        %v1146 = vsel %vm643, 0.0, %v1105
        %v1147 = vsel %vm644, 0.0, %v1107
        %v1148 = vsel %vm645, 0.0, %v1109
        %v1149 = vsel %vm646, 0.0, %v1111
        %v1150 = vsel %vm647, 0.0, %v1113
        %v1151 = vsel %vm648, 0.0, %v1115
        %v1152 = vsel %vm649, 0.0, %v1117
        %v1153 = vsel %vm650, 0.0, %v1119
        %v1154 = vsel %vm651, 0.0, %v1121
        %v1155 = vrot.slane %v1059, 1
        %v1156 = vrot.slane %v1060, 1
        %v1157 = vsel %vm668, %v1155, %v1156
        %v1158 = vrot.slane %v1061, 1
        %v1159 = vsel %vm668, %v1156, %v1158
        %v1160 = vrot.slane %v1062, 1
        %v1161 = vsel %vm668, %v1158, %v1160
        %v1162 = vrot.slane %v1063, 1
        %v1163 = vsel %vm668, %v1160, %v1162
        %v1164 = vrot.slane %v1064, 1
        %v1165 = vsel %vm668, %v1162, %v1164
        %v1166 = vrot.slane %v1065, 1
        %v1167 = vsel %vm668, %v1164, %v1166
        %v1168 = vrot.slane %v1066, 1
        %v1169 = vsel %vm668, %v1166, %v1168
        %v1170 = vrot.slane %v1067, 1
        %v1171 = vsel %vm668, %v1168, %v1170
        %v1172 = vrot.slane %v1068, 1
        %v1173 = vsel %vm668, %v1170, %v1172
        %v1174 = vrot.slane %v1069, 1
        %v1175 = vsel %vm668, %v1172, %v1174
        %v1176 = vrot.slane %v1070, 1
        %v1177 = vsel %vm668, %v1174, %v1176
        %v1178 = vrot.slane %v1071, 1
        %v1179 = vsel %vm668, %v1176, %v1178
        %v1180 = vrot.slane %v1072, 1
        %v1181 = vsel %vm668, %v1178, %v1180
        %v1182 = vrot.slane %v1073, 1
        %v1183 = vsel %vm668, %v1180, %v1182
        %v1184 = vrot.slane %v1074, 1
        %v1185 = vsel %vm668, %v1182, %v1184
        %v1202 = vsel %vm668, %v1184, 0.0
        %v1203 = vsel %vm733, 0.0, %v1157
        %v1204 = vsel %vm734, 0.0, %v1159
        %v1205 = vsel %vm735, 0.0, %v1161
        %v1206 = vsel %vm736, 0.0, %v1163
        %v1207 = vsel %vm737, 0.0, %v1165
        %v1208 = vsel %vm738, 0.0, %v1167
        %v1209 = vsel %vm739, 0.0, %v1169
        %v1210 = vsel %vm740, 0.0, %v1171
        %v1211 = vsel %vm741, 0.0, %v1173
        %v1212 = vsel %vm742, 0.0, %v1175
        %v1213 = vsel %vm743, 0.0, %v1177
        %v1214 = vsel %vm744, 0.0, %v1179
        %v1215 = vsel %vm745, 0.0, %v1181
        %v1216 = vsel %vm746, 0.0, %v1183
        %v1217 = vsel %vm747, 0.0, %v1185
        %v1218 = vsel %vm748, 0.0, %v1202
        %1219 = vrot.lane.b32.xlu0 %v1059, 64
        %v1220 = vpop.permute.xlu0 %1219
        %1221 = vrot.lane.b32.xlu0 %v1060, 64
        %v1222 = vpop.permute.xlu0 %1221
        %1223 = vrot.lane.b32.xlu0 %v1061, 64
        %v1224 = vpop.permute.xlu0 %1223
        %1225 = vrot.lane.b32.xlu0 %v1062, 64
        %v1226 = vpop.permute.xlu0 %1225
        %1227 = vrot.lane.b32.xlu0 %v1063, 64
        %v1228 = vpop.permute.xlu0 %1227
        %1229 = vrot.lane.b32.xlu0 %v1064, 64
        %v1230 = vpop.permute.xlu0 %1229
        %1231 = vrot.lane.b32.xlu0 %v1065, 64
        %v1232 = vpop.permute.xlu0 %1231
        %1233 = vrot.lane.b32.xlu0 %v1066, 64
        %v1234 = vpop.permute.xlu0 %1233
        %1235 = vrot.lane.b32.xlu0 %v1067, 64
        %v1236 = vpop.permute.xlu0 %1235
        %1237 = vrot.lane.b32.xlu0 %v1068, 64
        %v1238 = vpop.permute.xlu0 %1237
        %1239 = vrot.lane.b32.xlu0 %v1069, 64
        %v1240 = vpop.permute.xlu0 %1239
        %1241 = vrot.lane.b32.xlu0 %v1070, 64
        %v1242 = vpop.permute.xlu0 %1241
        %1243 = vrot.lane.b32.xlu0 %v1071, 64
        %v1244 = vpop.permute.xlu0 %1243
        %1245 = vrot.lane.b32.xlu0 %v1072, 64
        %v1246 = vpop.permute.xlu0 %1245
        %1247 = vrot.lane.b32.xlu0 %v1073, 64
        %v1248 = vpop.permute.xlu0 %1247
        %1249 = vrot.lane.b32.xlu0 %v1074, 64
        %v1250 = vpop.permute.xlu0 %1249
        %vm1267 = vcmask 523264
        %v1268 = vsel %vm1267, %v1139, %v1220
        %v1269 = vsel %vm1267, %v1140, %v1222
        %v1270 = vsel %vm1267, %v1141, %v1224
        %v1271 = vsel %vm1267, %v1142, %v1226
        %v1272 = vsel %vm1267, %v1143, %v1228
        %v1273 = vsel %vm1267, %v1144, %v1230
        %v1274 = vsel %vm1267, %v1145, %v1232
        %v1275 = vsel %vm1267, %v1146, %v1234
        %v1276 = vsel %vm1267, %v1147, %v1236
        %v1277 = vsel %vm1267, %v1148, %v1238
        %v1278 = vsel %vm1267, %v1149, %v1240
        %v1279 = vsel %vm1267, %v1150, %v1242
        %v1280 = vsel %vm1267, %v1151, %v1244
        %v1281 = vsel %vm1267, %v1152, %v1246
        %v1282 = vsel %vm1267, %v1153, %v1248
        %v1283 = vsel %vm1267, %v1154, %v1250
        %v1284 = vpack.c.bf16 %v1269, %v1268
        %v1285 = vpack.c.bf16 %v1204, %v1203
        %v1286 = vpack.c.bf16 %v1271, %v1270
        %v1287 = vpack.c.bf16 %v1206, %v1205
        %v1288 = vpack.c.bf16 %v1273, %v1272
        %v1289 = vpack.c.bf16 %v1208, %v1207
        %v1290 = vpack.c.bf16 %v1275, %v1274
        %v1291 = vpack.c.bf16 %v1210, %v1209
        %v1292 = vpack.c.bf16 %v1277, %v1276
        %v1293 = vpack.c.bf16 %v1212, %v1211
        %v1294 = vpack.c.bf16 %v1279, %v1278
        %v1295 = vpack.c.bf16 %v1214, %v1213
        %v1296 = vpack.c.bf16 %v1281, %v1280
        %v1297 = vpack.c.bf16 %v1216, %v1215
        %v1298 = vpack.c.bf16 %v1283, %v1282
        %v1299 = vpack.c.bf16 %v1218, %v1217
        %v1300 = vld [vmem:[%s3] sm:$0xf]
        %v1301 = vld [vmem:[%s3 + $0x4] sm:$0xf]
        %v1302 = vld [vmem:[%s3 + $0x8] sm:$0xf]
        %v1303 = vld [vmem:[%s3 + $0xc] sm:$0xf]
        %v1304 = vld [vmem:[%s3 + $0x10] sm:$0xf]
        %v1305 = vld [vmem:[%s3 + $0x14] sm:$0xf]
        %v1306 = vld [vmem:[%s3 + $0x18] sm:$0xf]
        %v1307 = vld [vmem:[%s3 + $0x1c] sm:$0xf]
        %v1308 = vld [vmem:[%s3 + $0x20] sm:$0xf]
        %v1309 = vld [vmem:[%s3 + $0x24] sm:$0xf]
        %v1310 = vld [vmem:[%s3 + $0x28] sm:$0xf]
        %v1311 = vld [vmem:[%s3 + $0x2c] sm:$0xf]
        %v1312 = vld [vmem:[%s3 + $0x30] sm:$0xf]
        %v1313 = vld [vmem:[%s3 + $0x34] sm:$0xf]
        %v1314 = vld [vmem:[%s3 + $0x38] sm:$0xf]
        %v1315 = vld [vmem:[%s3 + $0x3c] sm:$0xf]
        %v1316 = vld [vmem:[%s3 + $0x40] sm:$0xf]
        %v1317 = vld [vmem:[%s3 + $0x44] sm:$0xf]
        %v1318 = vld [vmem:[%s3 + $0x48] sm:$0xf]
        %v1319 = vld [vmem:[%s3 + $0x4c] sm:$0xf]
        %v1320 = vld [vmem:[%s3 + $0x50] sm:$0xf]
        %v1321 = vld [vmem:[%s3 + $0x54] sm:$0xf]
        %v1322 = vld [vmem:[%s3 + $0x58] sm:$0xf]
        %v1323 = vld [vmem:[%s3 + $0x5c] sm:$0xf]
        %v1324 = vld [vmem:[%s4] sm:$0x1]
        %v1326 = vlaneseq
        %v1327 = vshrl.u32 %v1326, 7
        %v1328 = vsub.s32 0, %v1327
        %v1329 = vrot.slane %v1324, %v1328
        %v1355 = vunpack.c.l.b16 %v1300
        %v1356 = vunpack.c.l.b16 %v1301
        %v1357 = vunpack.c.l.b16 %v1302
        %v1358 = vunpack.c.l.b16 %v1303
        %v1359 = vunpack.c.l.b16 %v1304
        %v1360 = vunpack.c.l.b16 %v1305
        %v1361 = vunpack.c.l.b16 %v1306
        %v1362 = vunpack.c.l.b16 %v1307
        %v1363 = vunpack.c.l.b16 %v1308
        %v1364 = vunpack.c.l.b16 %v1309
        %v1365 = vunpack.c.l.b16 %v1310
        %v1366 = vunpack.c.l.b16 %v1311
        %v1367 = vunpack.c.l.b16 %v1312
        %v1368 = vunpack.c.l.b16 %v1313
        %v1369 = vunpack.c.l.b16 %v1314
        %v1370 = vunpack.c.l.b16 %v1315
        %v1371 = vunpack.c.l.b16 %v1316
        %v1372 = vunpack.c.l.b16 %v1317
        %v1373 = vunpack.c.l.b16 %v1318
        %v1374 = vunpack.c.l.b16 %v1319
        %v1375 = vunpack.c.l.b16 %v1320
        %v1376 = vunpack.c.l.b16 %v1321
        %v1377 = vunpack.c.l.b16 %v1322
        %v1378 = vunpack.c.l.b16 %v1323
        %v1379 = vpack.c.b16 %v1356, %v1355
        %v1380 = vpack.c.b16 %v1358, %v1357
        %v1381 = vpack.c.b16 %v1360, %v1359
        %v1382 = vpack.c.b16 %v1362, %v1361
        %v1383 = vpack.c.b16 %v1364, %v1363
        %v1384 = vpack.c.b16 %v1366, %v1365
        %v1385 = vpack.c.b16 %v1368, %v1367
        %v1386 = vpack.c.b16 %v1370, %v1369
        %v1387 = vpack.c.b16 %v1372, %v1371
        %v1388 = vpack.c.b16 %v1374, %v1373
        %v1389 = vpack.c.b16 %v1376, %v1375
        %v1390 = vpack.c.b16 %v1378, %v1377
        %v1404 = vsel %vm1267, %v1285, 0
        %v1407 = vsel %vm1267, %v1287, 0
        %v1410 = vsel %vm1267, %v1289, 0
        %v1413 = vsel %vm1267, %v1291, 0
        %v1416 = vsel %vm1267, %v1293, 0
        %v1419 = vsel %vm1267, %v1295, 0
        %v1422 = vsel %vm1267, %v1297, 0
        %v1425 = vsel %vm1267, %v1299, 0
        %1427 = vmatprep.subr.bf16.mxu0 0
        %1428 = vmatpush1.bf16.msra.mxu0 %v1379
        %1429 = vmatprep.subr.bf16.mxu0 0
        %1430 = vmatpush1.bf16.msra.mxu0 %v1380
        %1431 = vmatprep.subr.bf16.mxu0 0
        %1432 = vmatpush1.bf16.msra.mxu0 %v1381
        %1433 = vmatprep.subr.bf16.mxu0 0
        %1434 = vmatpush1.bf16.msra.mxu0 %v1382
        %1435 = vmatprep.subr.bf16.mxu0 0
        %1436 = vmatpush1.bf16.msra.mxu0 %v1383
        %1437 = vmatprep.subr.bf16.mxu0 0
        %1438 = vmatpush1.bf16.msra.mxu0 %v1384
        %1439 = vmatprep.subr.bf16.mxu0 0
        %1440 = vmatpush1.bf16.msra.mxu0 %v1385
        %1441 = vmatprep.subr.bf16.mxu0 0
        %1442 = vmatpush1.bf16.msra.mxu0 %v1386
        %1443 = vmatprep.subr.bf16.mxu0 0
        %1444 = vmatpush1.bf16.msra.mxu0 %v1387
        %1445 = vmatprep.subr.bf16.mxu0 0
        %1446 = vmatpush1.bf16.msra.mxu0 %v1388
        %1447 = vmatprep.subr.bf16.mxu0 0
        %1448 = vmatpush1.bf16.msra.mxu0 %v1389
        %1449 = vmatprep.subr.bf16.mxu0 0
        %1450 = vmatpush1.bf16.msra.mxu0 %v1390
        %1451 = vmatprep.subr.bf16.mxu0 0
        %1452 = vmatpush1.bf16.msra.mxu0 0
        %1453 = vmatprep.subr.bf16.mxu0 0
        %1454 = vmatpush1.bf16.msra.mxu0 0
        %1455 = vmatprep.subr.bf16.mxu0 0
        %1456 = vmatpush1.bf16.msra.mxu0 0
        %1457 = vmatprep.subr.bf16.mxu0 0
        %1458 = vmatpush1.bf16.msra.mxu0 0
        %1459 = vmatprep.mubr.bf16.mxu0 %v1404
        %1460 = vmatmul.mubr.bf16.gmra.mrb[0].mxu0 %v1284
        %v1461 = vpop.f32.mrb[0].mxu0
        %v1462 = vadd.f32 %v1329, %v1461
        %v1463 = vpop.f32.mrb[0].mxu0
        %v1464 = vpop.f32.mrb[0].mxu0
        %v1465 = vadd.f32 %v1329, %v1464
        %v1466 = vpop.f32.mrb[0].mxu0
        %1467 = vmatprep.mubr.bf16.mxu0 %v1407
        %1468 = vmatmul.mubr.bf16.gmra.mrb[0].mxu0 %v1286
        %v1469 = vpop.f32.mrb[0].mxu0
        %v1470 = vadd.f32 %v1329, %v1469
        %v1471 = vpop.f32.mrb[0].mxu0
        %v1472 = vpop.f32.mrb[0].mxu0
        %v1473 = vadd.f32 %v1329, %v1472
        %v1474 = vpop.f32.mrb[0].mxu0
        %1475 = vmatprep.mubr.bf16.mxu0 %v1410
        %1476 = vmatmul.mubr.bf16.gmra.mrb[0].mxu0 %v1288
        %v1477 = vpop.f32.mrb[0].mxu0
        %v1478 = vadd.f32 %v1329, %v1477
        %v1479 = vpop.f32.mrb[0].mxu0
        %v1480 = vpop.f32.mrb[0].mxu0
        %v1481 = vadd.f32 %v1329, %v1480
        %v1482 = vpop.f32.mrb[0].mxu0
        %1483 = vmatprep.mubr.bf16.mxu0 %v1413
        %1484 = vmatmul.mubr.bf16.gmra.mrb[0].mxu0 %v1290
        %v1485 = vpop.f32.mrb[0].mxu0
        %v1486 = vadd.f32 %v1329, %v1485
        %v1487 = vpop.f32.mrb[0].mxu0
        %v1488 = vpop.f32.mrb[0].mxu0
        %v1489 = vadd.f32 %v1329, %v1488
        %v1490 = vpop.f32.mrb[0].mxu0
        %1491 = vmatprep.mubr.bf16.mxu0 %v1416
        %1492 = vmatmul.mubr.bf16.gmra.mrb[0].mxu0 %v1292
        %v1493 = vpop.f32.mrb[0].mxu0
        %v1494 = vadd.f32 %v1329, %v1493
        %v1495 = vpop.f32.mrb[0].mxu0
        %v1496 = vpop.f32.mrb[0].mxu0
        %v1497 = vadd.f32 %v1329, %v1496
        %v1498 = vpop.f32.mrb[0].mxu0
        %1499 = vmatprep.mubr.bf16.mxu0 %v1419
        %1500 = vmatmul.mubr.bf16.gmra.mrb[0].mxu0 %v1294
        %v1501 = vpop.f32.mrb[0].mxu0
        %v1502 = vadd.f32 %v1329, %v1501
        %v1503 = vpop.f32.mrb[0].mxu0
        %v1504 = vpop.f32.mrb[0].mxu0
        %v1505 = vadd.f32 %v1329, %v1504
        %v1506 = vpop.f32.mrb[0].mxu0
        %1507 = vmatprep.mubr.bf16.mxu0 %v1422
        %1508 = vmatmul.mubr.bf16.gmra.mrb[0].mxu0 %v1296
        %v1509 = vpop.f32.mrb[0].mxu0
        %v1510 = vadd.f32 %v1329, %v1509
        %v1511 = vpop.f32.mrb[0].mxu0
        %v1512 = vpop.f32.mrb[0].mxu0
        %v1513 = vadd.f32 %v1329, %v1512
        %v1514 = vpop.f32.mrb[0].mxu0
        %1515 = vmatprep.mubr.bf16.mxu0 %v1425
        %1516 = vmatmul.mubr.bf16.gmra.mrb[0].mxu0 %v1298
        %v1517 = vpop.f32.mrb[0].mxu0
        %v1518 = vadd.f32 %v1329, %v1517
        %v1519 = vpop.f32.mrb[0].mxu0
        %v1520 = vpop.f32.mrb[0].mxu0
        %v1521 = vadd.f32 %v1329, %v1520
        %v1522 = vpop.f32.mrb[0].mxu0
        %1523 = vdwg.mxu0
        %v1524 = vmax.f32 %v1462, 0.0
        %v1525 = vmax.f32 %v1465, 0.0
        %v1526 = vmax.f32 %v1470, 0.0
        %v1527 = vmax.f32 %v1473, 0.0
        %v1528 = vmax.f32 %v1478, 0.0
        %v1529 = vmax.f32 %v1481, 0.0
        %v1530 = vmax.f32 %v1486, 0.0
        %v1531 = vmax.f32 %v1489, 0.0
        %v1532 = vmax.f32 %v1494, 0.0
        %v1533 = vmax.f32 %v1497, 0.0
        %v1534 = vmax.f32 %v1502, 0.0
        %v1535 = vmax.f32 %v1505, 0.0
        %v1536 = vmax.f32 %v1510, 0.0
        %v1537 = vmax.f32 %v1513, 0.0
        %v1538 = vmax.f32 %v1518, 0.0
        %v1539 = vmax.f32 %v1521, 0.0
        %v1556 = vrot.slane %v1524, 7
        %v1557 = vrot.slane %v1525, 7
        %v1558 = vsel %vm571, %v1556, %v1557
        %v1559 = vrot.slane %v1526, 7
        %v1560 = vsel %vm571, %v1557, %v1559
        %v1561 = vrot.slane %v1527, 7
        %v1562 = vsel %vm571, %v1559, %v1561
        %v1563 = vrot.slane %v1528, 7
        %v1564 = vsel %vm571, %v1561, %v1563
        %v1565 = vrot.slane %v1529, 7
        %v1566 = vsel %vm571, %v1563, %v1565
        %v1567 = vrot.slane %v1530, 7
        %v1568 = vsel %vm571, %v1565, %v1567
        %v1569 = vrot.slane %v1531, 7
        %v1570 = vsel %vm571, %v1567, %v1569
        %v1571 = vrot.slane %v1532, 7
        %v1572 = vsel %vm571, %v1569, %v1571
        %v1573 = vrot.slane %v1533, 7
        %v1574 = vsel %vm571, %v1571, %v1573
        %v1575 = vrot.slane %v1534, 7
        %v1576 = vsel %vm571, %v1573, %v1575
        %v1577 = vrot.slane %v1535, 7
        %v1578 = vsel %vm571, %v1575, %v1577
        %v1579 = vrot.slane %v1536, 7
        %v1580 = vsel %vm571, %v1577, %v1579
        %v1581 = vrot.slane %v1537, 7
        %v1582 = vsel %vm571, %v1579, %v1581
        %v1583 = vrot.slane %v1538, 7
        %v1584 = vsel %vm571, %v1581, %v1583
        %v1585 = vrot.slane %v1539, 7
        %v1586 = vsel %vm571, %v1583, %v1585
        %v1603 = vsel %vm571, 0.0, %v1556
        %v1604 = vsel %vm636, 0.0, %v1603
        %v1605 = vsel %vm637, 0.0, %v1558
        %v1606 = vsel %vm638, 0.0, %v1560
        %v1607 = vsel %vm639, 0.0, %v1562
        %v1608 = vsel %vm640, 0.0, %v1564
        %v1609 = vsel %vm641, 0.0, %v1566
        %v1610 = vsel %vm642, 0.0, %v1568
        %v1611 = vsel %vm643, 0.0, %v1570
        %v1612 = vsel %vm644, 0.0, %v1572
        %v1613 = vsel %vm645, 0.0, %v1574
        %v1614 = vsel %vm646, 0.0, %v1576
        %v1615 = vsel %vm647, 0.0, %v1578
        %v1616 = vsel %vm648, 0.0, %v1580
        %v1617 = vsel %vm649, 0.0, %v1582
        %v1618 = vsel %vm650, 0.0, %v1584
        %v1619 = vsel %vm651, 0.0, %v1586
        %v1620 = vrot.slane %v1524, 1
        %v1621 = vrot.slane %v1525, 1
        %v1622 = vsel %vm668, %v1620, %v1621
        %v1623 = vrot.slane %v1526, 1
        %v1624 = vsel %vm668, %v1621, %v1623
        %v1625 = vrot.slane %v1527, 1
        %v1626 = vsel %vm668, %v1623, %v1625
        %v1627 = vrot.slane %v1528, 1
        %v1628 = vsel %vm668, %v1625, %v1627
        %v1629 = vrot.slane %v1529, 1
        %v1630 = vsel %vm668, %v1627, %v1629
        %v1631 = vrot.slane %v1530, 1
        %v1632 = vsel %vm668, %v1629, %v1631
        %v1633 = vrot.slane %v1531, 1
        %v1634 = vsel %vm668, %v1631, %v1633
        %v1635 = vrot.slane %v1532, 1
        %v1636 = vsel %vm668, %v1633, %v1635
        %v1637 = vrot.slane %v1533, 1
        %v1638 = vsel %vm668, %v1635, %v1637
        %v1639 = vrot.slane %v1534, 1
        %v1640 = vsel %vm668, %v1637, %v1639
        %v1641 = vrot.slane %v1535, 1
        %v1642 = vsel %vm668, %v1639, %v1641
        %v1643 = vrot.slane %v1536, 1
        %v1644 = vsel %vm668, %v1641, %v1643
        %v1645 = vrot.slane %v1537, 1
        %v1646 = vsel %vm668, %v1643, %v1645
        %v1647 = vrot.slane %v1538, 1
        %v1648 = vsel %vm668, %v1645, %v1647
        %v1649 = vrot.slane %v1539, 1
        %v1650 = vsel %vm668, %v1647, %v1649
        %v1667 = vsel %vm668, %v1649, 0.0
        %v1668 = vsel %vm733, 0.0, %v1622
        %v1669 = vsel %vm734, 0.0, %v1624
        %v1670 = vsel %vm735, 0.0, %v1626
        %v1671 = vsel %vm736, 0.0, %v1628
        %v1672 = vsel %vm737, 0.0, %v1630
        %v1673 = vsel %vm738, 0.0, %v1632
        %v1674 = vsel %vm739, 0.0, %v1634
        %v1675 = vsel %vm740, 0.0, %v1636
        %v1676 = vsel %vm741, 0.0, %v1638
        %v1677 = vsel %vm742, 0.0, %v1640
        %v1678 = vsel %vm743, 0.0, %v1642
        %v1679 = vsel %vm744, 0.0, %v1644
        %v1680 = vsel %vm745, 0.0, %v1646
        %v1681 = vsel %vm746, 0.0, %v1648
        %v1682 = vsel %vm747, 0.0, %v1650
        %v1683 = vsel %vm748, 0.0, %v1667
        %v1684 = vpack.c.bf16 %v1605, %v1604
        %v1685 = vpack.c.bf16 %v1525, %v1524
        %v1686 = vpack.c.bf16 %v1669, %v1668
        %v1687 = vpack.c.bf16 %v1607, %v1606
        %v1688 = vpack.c.bf16 %v1527, %v1526
        %v1689 = vpack.c.bf16 %v1671, %v1670
        %v1690 = vpack.c.bf16 %v1609, %v1608
        %v1691 = vpack.c.bf16 %v1529, %v1528
        %v1692 = vpack.c.bf16 %v1673, %v1672
        %v1693 = vpack.c.bf16 %v1611, %v1610
        %v1694 = vpack.c.bf16 %v1531, %v1530
        %v1695 = vpack.c.bf16 %v1675, %v1674
        %v1696 = vpack.c.bf16 %v1613, %v1612
        %v1697 = vpack.c.bf16 %v1533, %v1532
        %v1698 = vpack.c.bf16 %v1677, %v1676
        %v1699 = vpack.c.bf16 %v1615, %v1614
        %v1700 = vpack.c.bf16 %v1535, %v1534
        %v1701 = vpack.c.bf16 %v1679, %v1678
        %v1702 = vpack.c.bf16 %v1617, %v1616
        %v1703 = vpack.c.bf16 %v1537, %v1536
        %v1704 = vpack.c.bf16 %v1681, %v1680
        %v1705 = vpack.c.bf16 %v1619, %v1618
        %v1706 = vpack.c.bf16 %v1539, %v1538
        %v1707 = vpack.c.bf16 %v1683, %v1682
        %v1708 = vld [vmem:[#allocation2] sm:$0xff]
        %v1709 = vld [vmem:[#allocation2 + $0x8] sm:$0xff]
        %v1710 = vld [vmem:[#allocation2 + $0x10] sm:$0xff]
        %v1711 = vld [vmem:[#allocation2 + $0x18] sm:$0xff]
        %v1712 = vld [vmem:[#allocation2 + $0x20] sm:$0xff]
        %v1713 = vld [vmem:[#allocation2 + $0x28] sm:$0xff]
        %v1714 = vld [vmem:[#allocation2 + $0x30] sm:$0xff]
        %v1715 = vld [vmem:[#allocation2 + $0x38] sm:$0xff]
        %v1716 = vld [vmem:[#allocation2 + $0x40] sm:$0xff]
        %v1717 = vld [vmem:[#allocation2 + $0x48] sm:$0xff]
        %v1718 = vld [vmem:[#allocation2 + $0x50] sm:$0xff]
        %v1719 = vld [vmem:[#allocation2 + $0x58] sm:$0xff]
        %v1720 = vld [vmem:[#allocation2 + $0x60] sm:$0xff]
        %v1721 = vld [vmem:[#allocation2 + $0x68] sm:$0xff]
        %v1722 = vld [vmem:[#allocation2 + $0x70] sm:$0xff]
        %v1723 = vld [vmem:[#allocation2 + $0x78] sm:$0xff]
        %v1724 = vld [vmem:[#allocation2 + $0x80] sm:$0xff]
        %v1725 = vld [vmem:[#allocation2 + $0x88] sm:$0xff]
        %v1726 = vld [vmem:[#allocation2 + $0x90] sm:$0xff]
        %v1727 = vld [vmem:[#allocation2 + $0x98] sm:$0xff]
        %v1728 = vld [vmem:[#allocation2 + $0xa0] sm:$0xff]
        %v1729 = vld [vmem:[#allocation2 + $0xa8] sm:$0xff]
        %v1730 = vld [vmem:[#allocation2 + $0xb0] sm:$0xff]
        %v1731 = vld [vmem:[#allocation2 + $0xb8] sm:$0xff]
        %v1732 = vld [vmem:[#allocation2 + $0xc0] sm:$0xff]
        %v1733 = vld [vmem:[#allocation2 + $0xc8] sm:$0xff]
        %v1734 = vld [vmem:[#allocation2 + $0xd0] sm:$0xff]
        %v1735 = vld [vmem:[#allocation2 + $0xd8] sm:$0xff]
        %v1736 = vld [vmem:[#allocation2 + $0xe0] sm:$0xff]
        %v1737 = vld [vmem:[#allocation2 + $0xe8] sm:$0xff]
        %v1738 = vld [vmem:[#allocation2 + $0xf0] sm:$0xff]
        %v1739 = vld [vmem:[#allocation2 + $0xf8] sm:$0xff]
        %v1740 = vld [vmem:[#allocation2 + $0x100] sm:$0xff]
        %v1741 = vld [vmem:[#allocation2 + $0x108] sm:$0xff]
        %v1742 = vld [vmem:[#allocation2 + $0x110] sm:$0xff]
        %v1743 = vld [vmem:[#allocation2 + $0x118] sm:$0xff]
        %v1744 = vld [vmem:[#allocation2 + $0x120] sm:$0xff]
        %v1745 = vld [vmem:[#allocation2 + $0x128] sm:$0xff]
        %v1746 = vld [vmem:[#allocation2 + $0x130] sm:$0xff]
        %v1747 = vld [vmem:[#allocation2 + $0x138] sm:$0xff]
        %v1748 = vld [vmem:[#allocation2 + $0x140] sm:$0xff]
        %v1749 = vld [vmem:[#allocation2 + $0x148] sm:$0xff]
        %v1750 = vld [vmem:[#allocation2 + $0x150] sm:$0xff]
        %v1751 = vld [vmem:[#allocation2 + $0x158] sm:$0xff]
        %v1752 = vld [vmem:[#allocation2 + $0x160] sm:$0xff]
        %v1753 = vld [vmem:[#allocation2 + $0x168] sm:$0xff]
        %v1754 = vld [vmem:[#allocation2 + $0x170] sm:$0xff]
        %v1755 = vld [vmem:[#allocation2 + $0x178] sm:$0xff]
        %v1756 = vld [vmem:[%s6] sm:$0x3]
        %v1758 = vlaneseq
        %v1759 = vshrl.u32 %v1758, 7
        %v1760 = vsub.s32 0, %v1759
        %v1761 = vrot.slane %v1756, %v1760
        %v1762 = vlaneseq
        %v1763 = vshrl.u32 %v1762, 7
        %v1764 = vsub.s32 1, %v1763
        %v1765 = vrot.slane %v1756, %v1764
        %v1816 = vunpack.c.l.b16 %v1708
        %v1817 = vunpack.c.h.b16 %v1708
        %v1818 = vunpack.c.l.b16 %v1709
        %v1819 = vunpack.c.h.b16 %v1709
        %v1820 = vunpack.c.l.b16 %v1710
        %v1821 = vunpack.c.h.b16 %v1710
        %v1822 = vunpack.c.l.b16 %v1711
        %v1823 = vunpack.c.h.b16 %v1711
        %v1824 = vunpack.c.l.b16 %v1712
        %v1825 = vunpack.c.h.b16 %v1712
        %v1826 = vunpack.c.l.b16 %v1713
        %v1827 = vunpack.c.h.b16 %v1713
        %v1828 = vunpack.c.l.b16 %v1714
        %v1829 = vunpack.c.h.b16 %v1714
        %v1830 = vunpack.c.l.b16 %v1715
        %v1831 = vunpack.c.h.b16 %v1715
        %v1832 = vunpack.c.l.b16 %v1716
        %v1833 = vunpack.c.h.b16 %v1716
        %v1834 = vunpack.c.l.b16 %v1717
        %v1835 = vunpack.c.h.b16 %v1717
        %v1836 = vunpack.c.l.b16 %v1718
        %v1837 = vunpack.c.h.b16 %v1718
        %v1838 = vunpack.c.l.b16 %v1719
        %v1839 = vunpack.c.h.b16 %v1719
        %v1840 = vunpack.c.l.b16 %v1720
        %v1841 = vunpack.c.h.b16 %v1720
        %v1842 = vunpack.c.l.b16 %v1721
        %v1843 = vunpack.c.h.b16 %v1721
        %v1844 = vunpack.c.l.b16 %v1722
        %v1845 = vunpack.c.h.b16 %v1722
        %v1846 = vunpack.c.l.b16 %v1723
        %v1847 = vunpack.c.h.b16 %v1723
        %v1848 = vunpack.c.l.b16 %v1724
        %v1849 = vunpack.c.h.b16 %v1724
        %v1850 = vunpack.c.l.b16 %v1725
        %v1851 = vunpack.c.h.b16 %v1725
        %v1852 = vunpack.c.l.b16 %v1726
        %v1853 = vunpack.c.h.b16 %v1726
        %v1854 = vunpack.c.l.b16 %v1727
        %v1855 = vunpack.c.h.b16 %v1727
        %v1856 = vunpack.c.l.b16 %v1728
        %v1857 = vunpack.c.h.b16 %v1728
        %v1858 = vunpack.c.l.b16 %v1729
        %v1859 = vunpack.c.h.b16 %v1729
        %v1860 = vunpack.c.l.b16 %v1730
        %v1861 = vunpack.c.h.b16 %v1730
        %v1862 = vunpack.c.l.b16 %v1731
        %v1863 = vunpack.c.h.b16 %v1731
        %v1864 = vunpack.c.l.b16 %v1732
        %v1865 = vunpack.c.h.b16 %v1732
        %v1866 = vunpack.c.l.b16 %v1733
        %v1867 = vunpack.c.h.b16 %v1733
        %v1868 = vunpack.c.l.b16 %v1734
        %v1869 = vunpack.c.h.b16 %v1734
        %v1870 = vunpack.c.l.b16 %v1735
        %v1871 = vunpack.c.h.b16 %v1735
        %v1872 = vunpack.c.l.b16 %v1736
        %v1873 = vunpack.c.h.b16 %v1736
        %v1874 = vunpack.c.l.b16 %v1737
        %v1875 = vunpack.c.h.b16 %v1737
        %v1876 = vunpack.c.l.b16 %v1738
        %v1877 = vunpack.c.h.b16 %v1738
        %v1878 = vunpack.c.l.b16 %v1739
        %v1879 = vunpack.c.h.b16 %v1739
        %v1880 = vunpack.c.l.b16 %v1740
        %v1881 = vunpack.c.h.b16 %v1740
        %v1882 = vunpack.c.l.b16 %v1741
        %v1883 = vunpack.c.h.b16 %v1741
        %v1884 = vunpack.c.l.b16 %v1742
        %v1885 = vunpack.c.h.b16 %v1742
        %v1886 = vunpack.c.l.b16 %v1743
        %v1887 = vunpack.c.h.b16 %v1743
        %v1888 = vunpack.c.l.b16 %v1744
        %v1889 = vunpack.c.h.b16 %v1744
        %v1890 = vunpack.c.l.b16 %v1745
        %v1891 = vunpack.c.h.b16 %v1745
        %v1892 = vunpack.c.l.b16 %v1746
        %v1893 = vunpack.c.h.b16 %v1746
        %v1894 = vunpack.c.l.b16 %v1747
        %v1895 = vunpack.c.h.b16 %v1747
        %v1896 = vunpack.c.l.b16 %v1748
        %v1897 = vunpack.c.h.b16 %v1748
        %v1898 = vunpack.c.l.b16 %v1749
        %v1899 = vunpack.c.h.b16 %v1749
        %v1900 = vunpack.c.l.b16 %v1750
        %v1901 = vunpack.c.h.b16 %v1750
        %v1902 = vunpack.c.l.b16 %v1751
        %v1903 = vunpack.c.h.b16 %v1751
        %v1904 = vunpack.c.l.b16 %v1752
        %v1905 = vunpack.c.h.b16 %v1752
        %v1906 = vunpack.c.l.b16 %v1753
        %v1907 = vunpack.c.h.b16 %v1753
        %v1908 = vunpack.c.l.b16 %v1754
        %v1909 = vunpack.c.h.b16 %v1754
        %v1910 = vunpack.c.l.b16 %v1755
        %v1911 = vunpack.c.h.b16 %v1755
        %v1912 = vpack.c.b16 %v1818, %v1816
        %v1913 = vpack.c.b16 %v1819, %v1817
        %v1914 = vpack.c.b16 %v1822, %v1820
        %v1915 = vpack.c.b16 %v1823, %v1821
        %v1916 = vpack.c.b16 %v1826, %v1824
        %v1917 = vpack.c.b16 %v1827, %v1825
        %v1918 = vpack.c.b16 %v1830, %v1828
        %v1919 = vpack.c.b16 %v1831, %v1829
        %v1920 = vpack.c.b16 %v1834, %v1832
        %v1921 = vpack.c.b16 %v1835, %v1833
        %v1922 = vpack.c.b16 %v1838, %v1836
        %v1923 = vpack.c.b16 %v1839, %v1837
        %v1924 = vpack.c.b16 %v1842, %v1840
        %v1925 = vpack.c.b16 %v1843, %v1841
        %v1926 = vpack.c.b16 %v1846, %v1844
        %v1927 = vpack.c.b16 %v1847, %v1845
        %v1928 = vpack.c.b16 %v1850, %v1848
        %v1929 = vpack.c.b16 %v1851, %v1849
        %v1930 = vpack.c.b16 %v1854, %v1852
        %v1931 = vpack.c.b16 %v1855, %v1853
        %v1932 = vpack.c.b16 %v1858, %v1856
        %v1933 = vpack.c.b16 %v1859, %v1857
        %v1934 = vpack.c.b16 %v1862, %v1860
        %v1935 = vpack.c.b16 %v1863, %v1861
        %v1936 = vpack.c.b16 %v1866, %v1864
        %v1937 = vpack.c.b16 %v1867, %v1865
        %v1938 = vpack.c.b16 %v1870, %v1868
        %v1939 = vpack.c.b16 %v1871, %v1869
        %v1940 = vpack.c.b16 %v1874, %v1872
        %v1941 = vpack.c.b16 %v1875, %v1873
        %v1942 = vpack.c.b16 %v1878, %v1876
        %v1943 = vpack.c.b16 %v1879, %v1877
        %v1944 = vpack.c.b16 %v1882, %v1880
        %v1945 = vpack.c.b16 %v1883, %v1881
        %v1946 = vpack.c.b16 %v1886, %v1884
        %v1947 = vpack.c.b16 %v1887, %v1885
        %v1948 = vpack.c.b16 %v1890, %v1888
        %v1949 = vpack.c.b16 %v1891, %v1889
        %v1950 = vpack.c.b16 %v1894, %v1892
        %v1951 = vpack.c.b16 %v1895, %v1893
        %v1952 = vpack.c.b16 %v1898, %v1896
        %v1953 = vpack.c.b16 %v1899, %v1897
        %v1954 = vpack.c.b16 %v1902, %v1900
        %v1955 = vpack.c.b16 %v1903, %v1901
        %v1956 = vpack.c.b16 %v1906, %v1904
        %v1957 = vpack.c.b16 %v1907, %v1905
        %v1958 = vpack.c.b16 %v1910, %v1908
        %v1959 = vpack.c.b16 %v1911, %v1909
        %2008 = vmatprep.subr.bf16.mxu0 %v1913
        %2009 = vmatpush1.bf16.msra.mxu0 %v1912
        %2010 = vmatprep.subr.bf16.mxu0 %v1915
        %2011 = vmatpush1.bf16.msra.mxu0 %v1914
        %2012 = vmatprep.subr.bf16.mxu0 %v1917
        %2013 = vmatpush1.bf16.msra.mxu0 %v1916
        %2014 = vmatprep.subr.bf16.mxu0 %v1919
        %2015 = vmatpush1.bf16.msra.mxu0 %v1918
        %2016 = vmatprep.subr.bf16.mxu0 %v1921
        %2017 = vmatpush1.bf16.msra.mxu0 %v1920
        %2018 = vmatprep.subr.bf16.mxu0 %v1923
        %2019 = vmatpush1.bf16.msra.mxu0 %v1922
        %2020 = vmatprep.subr.bf16.mxu0 %v1925
        %2021 = vmatpush1.bf16.msra.mxu0 %v1924
        %2022 = vmatprep.subr.bf16.mxu0 %v1927
        %2023 = vmatpush1.bf16.msra.mxu0 %v1926
        %2024 = vmatprep.subr.bf16.mxu0 %v1929
        %2025 = vmatpush1.bf16.msra.mxu0 %v1928
        %2026 = vmatprep.subr.bf16.mxu0 %v1931
        %2027 = vmatpush1.bf16.msra.mxu0 %v1930
        %2028 = vmatprep.subr.bf16.mxu0 %v1933
        %2029 = vmatpush1.bf16.msra.mxu0 %v1932
        %2030 = vmatprep.subr.bf16.mxu0 %v1935
        %2031 = vmatpush1.bf16.msra.mxu0 %v1934
        %2032 = vmatprep.subr.bf16.mxu0 %v1937
        %2033 = vmatpush1.bf16.msra.mxu0 %v1936
        %2034 = vmatprep.subr.bf16.mxu0 %v1939
        %2035 = vmatpush1.bf16.msra.mxu0 %v1938
        %2036 = vmatprep.subr.bf16.mxu0 %v1941
        %2037 = vmatpush1.bf16.msra.mxu0 %v1940
        %2038 = vmatprep.subr.bf16.mxu0 %v1943
        %2039 = vmatpush1.bf16.msra.mxu0 %v1942
        %2040 = vmatprep.mubr.bf16.mxu0 %v1685
        %2041 = vmatmul.mubr.bf16.gmra.mrb[0].mxu0 %v1684
        %v2042 = vpop.f32.mrb[0].mxu0
        %v2043 = vadd.f32 %v1761, %v2042
        %v2044 = vpop.f32.mrb[0].mxu0
        %v2045 = vadd.f32 %v1765, %v2044
        %v2046 = vpop.f32.mrb[0].mxu0
        %v2047 = vadd.f32 %v1761, %v2046
        %v2048 = vpop.f32.mrb[0].mxu0
        %v2049 = vadd.f32 %v1765, %v2048
        %2050 = vmatprep.mubr.bf16.mxu0 %v1688
        %2051 = vmatmul.mubr.bf16.gmra.mrb[0].mxu0 %v1687
        %v2052 = vpop.f32.mrb[0].mxu0
        %v2053 = vadd.f32 %v1761, %v2052
        %v2054 = vpop.f32.mrb[0].mxu0
        %v2055 = vadd.f32 %v1765, %v2054
        %v2056 = vpop.f32.mrb[0].mxu0
        %v2057 = vadd.f32 %v1761, %v2056
        %v2058 = vpop.f32.mrb[0].mxu0
        %v2059 = vadd.f32 %v1765, %v2058
        %2060 = vmatprep.mubr.bf16.mxu0 %v1691
        %2061 = vmatmul.mubr.bf16.gmra.mrb[0].mxu0 %v1690
        %v2062 = vpop.f32.mrb[0].mxu0
        %v2063 = vadd.f32 %v1761, %v2062
        %v2064 = vpop.f32.mrb[0].mxu0
        %v2065 = vadd.f32 %v1765, %v2064
        %v2066 = vpop.f32.mrb[0].mxu0
        %v2067 = vadd.f32 %v1761, %v2066
        %v2068 = vpop.f32.mrb[0].mxu0
        %v2069 = vadd.f32 %v1765, %v2068
        %2070 = vmatprep.mubr.bf16.mxu0 %v1694
        %2071 = vmatmul.mubr.bf16.gmra.mrb[0].mxu0 %v1693
        %v2072 = vpop.f32.mrb[0].mxu0
        %v2073 = vadd.f32 %v1761, %v2072
        %v2074 = vpop.f32.mrb[0].mxu0
        %v2075 = vadd.f32 %v1765, %v2074
        %v2076 = vpop.f32.mrb[0].mxu0
        %v2077 = vadd.f32 %v1761, %v2076
        %v2078 = vpop.f32.mrb[0].mxu0
        %v2079 = vadd.f32 %v1765, %v2078
        %2080 = vmatprep.mubr.bf16.mxu0 %v1697
        %2081 = vmatmul.mubr.bf16.gmra.mrb[0].mxu0 %v1696
        %v2082 = vpop.f32.mrb[0].mxu0
        %v2083 = vadd.f32 %v1761, %v2082
        %v2084 = vpop.f32.mrb[0].mxu0
        %v2085 = vadd.f32 %v1765, %v2084
        %v2086 = vpop.f32.mrb[0].mxu0
        %v2087 = vadd.f32 %v1761, %v2086
        %v2088 = vpop.f32.mrb[0].mxu0
        %v2089 = vadd.f32 %v1765, %v2088
        %2090 = vmatprep.mubr.bf16.mxu0 %v1700
        %2091 = vmatmul.mubr.bf16.gmra.mrb[0].mxu0 %v1699
        %v2092 = vpop.f32.mrb[0].mxu0
        %v2093 = vadd.f32 %v1761, %v2092
        %v2094 = vpop.f32.mrb[0].mxu0
        %v2095 = vadd.f32 %v1765, %v2094
        %v2096 = vpop.f32.mrb[0].mxu0
        %v2097 = vadd.f32 %v1761, %v2096
        %v2098 = vpop.f32.mrb[0].mxu0
        %v2099 = vadd.f32 %v1765, %v2098
        %2100 = vmatprep.mubr.bf16.mxu0 %v1703
        %2101 = vmatmul.mubr.bf16.gmra.mrb[0].mxu0 %v1702
        %v2102 = vpop.f32.mrb[0].mxu0
        %v2103 = vadd.f32 %v1761, %v2102
        %v2104 = vpop.f32.mrb[0].mxu0
        %v2105 = vadd.f32 %v1765, %v2104
        %v2106 = vpop.f32.mrb[0].mxu0
        %v2107 = vadd.f32 %v1761, %v2106
        %v2108 = vpop.f32.mrb[0].mxu0
        %v2109 = vadd.f32 %v1765, %v2108
        %2110 = vmatprep.mubr.bf16.mxu0 %v1706
        %2111 = vmatmul.mubr.bf16.gmra.mrb[0].mxu0 %v1705
        %v2112 = vpop.f32.mrb[0].mxu0
        %v2113 = vadd.f32 %v1761, %v2112
        %v2114 = vpop.f32.mrb[0].mxu0
        %v2115 = vadd.f32 %v1765, %v2114
        %v2116 = vpop.f32.mrb[0].mxu0
        %v2117 = vadd.f32 %v1761, %v2116
        %v2118 = vpop.f32.mrb[0].mxu0
        %v2119 = vadd.f32 %v1765, %v2118
        %2120 = vdwg.mxu0
        %2121 = vmatprep.subr.bf16.mxu0 %v1945
        %2122 = vmatpush1.bf16.msra.mxu0 %v1944
        %2123 = vmatprep.subr.bf16.mxu0 %v1947
        %2124 = vmatpush1.bf16.msra.mxu0 %v1946
        %2125 = vmatprep.subr.bf16.mxu0 %v1949
        %2126 = vmatpush1.bf16.msra.mxu0 %v1948
        %2127 = vmatprep.subr.bf16.mxu0 %v1951
        %2128 = vmatpush1.bf16.msra.mxu0 %v1950
        %2129 = vmatprep.subr.bf16.mxu0 %v1953
        %2130 = vmatpush1.bf16.msra.mxu0 %v1952
        %2131 = vmatprep.subr.bf16.mxu0 %v1955
        %2132 = vmatpush1.bf16.msra.mxu0 %v1954
        %2133 = vmatprep.subr.bf16.mxu0 %v1957
        %2134 = vmatpush1.bf16.msra.mxu0 %v1956
        %2135 = vmatprep.subr.bf16.mxu0 %v1959
        %2136 = vmatpush1.bf16.msra.mxu0 %v1958
        %2137 = vmatprep.subr.bf16.mxu0 0
        %2138 = vmatpush1.bf16.msra.mxu0 0
        %2139 = vmatprep.subr.bf16.mxu0 0
        %2140 = vmatpush1.bf16.msra.mxu0 0
        %2141 = vmatprep.subr.bf16.mxu0 0
        %2142 = vmatpush1.bf16.msra.mxu0 0
        %2143 = vmatprep.subr.bf16.mxu0 0
        %2144 = vmatpush1.bf16.msra.mxu0 0
        %2145 = vmatprep.subr.bf16.mxu0 0
        %2146 = vmatpush1.bf16.msra.mxu0 0
        %2147 = vmatprep.subr.bf16.mxu0 0
        %2148 = vmatpush1.bf16.msra.mxu0 0
        %2149 = vmatprep.subr.bf16.mxu0 0
        %2150 = vmatpush1.bf16.msra.mxu0 0
        %2151 = vmatprep.subr.bf16.mxu0 0
        %2152 = vmatpush1.bf16.msra.mxu0 0
        %2153 = vmatprep.mubr.bf16.mxu0 0
        %2154 = vmatmul.mubr.bf16.gmra.mrb[0].mxu0 %v1686
        %v2155 = vpop.f32.mrb[0].mxu0
        %v2156 = vadd.f32 %v2043, %v2155
        %v2157 = vpop.f32.mrb[0].mxu0
        %v2158 = vadd.f32 %v2045, %v2157
        %v2159 = vpop.f32.mrb[0].mxu0
        %v2160 = vadd.f32 %v2047, %v2159
        %v2161 = vpop.f32.mrb[0].mxu0
        %v2162 = vadd.f32 %v2049, %v2161
        %2163 = vmatprep.mubr.bf16.mxu0 0
        %2164 = vmatmul.mubr.bf16.gmra.mrb[0].mxu0 %v1689
        %v2165 = vpop.f32.mrb[0].mxu0
        %v2166 = vadd.f32 %v2053, %v2165
        %v2167 = vpop.f32.mrb[0].mxu0
        %v2168 = vadd.f32 %v2055, %v2167
        %v2169 = vpop.f32.mrb[0].mxu0
        %v2170 = vadd.f32 %v2057, %v2169
        %v2171 = vpop.f32.mrb[0].mxu0
        %v2172 = vadd.f32 %v2059, %v2171
        %2173 = vmatprep.mubr.bf16.mxu0 0
        %2174 = vmatmul.mubr.bf16.gmra.mrb[0].mxu0 %v1692
        %v2175 = vpop.f32.mrb[0].mxu0
        %v2176 = vadd.f32 %v2063, %v2175
        %v2177 = vpop.f32.mrb[0].mxu0
        %v2178 = vadd.f32 %v2065, %v2177
        %v2179 = vpop.f32.mrb[0].mxu0
        %v2180 = vadd.f32 %v2067, %v2179
        %v2181 = vpop.f32.mrb[0].mxu0
        %v2182 = vadd.f32 %v2069, %v2181
        %2183 = vmatprep.mubr.bf16.mxu0 0
        %2184 = vmatmul.mubr.bf16.gmra.mrb[0].mxu0 %v1695
        %v2185 = vpop.f32.mrb[0].mxu0
        %v2186 = vadd.f32 %v2073, %v2185
        %v2187 = vpop.f32.mrb[0].mxu0
        %v2188 = vadd.f32 %v2075, %v2187
        %v2189 = vpop.f32.mrb[0].mxu0
        %v2190 = vadd.f32 %v2077, %v2189
        %v2191 = vpop.f32.mrb[0].mxu0
        %v2192 = vadd.f32 %v2079, %v2191
        %2193 = vmatprep.mubr.bf16.mxu0 0
        %2194 = vmatmul.mubr.bf16.gmra.mrb[0].mxu0 %v1698
        %v2195 = vpop.f32.mrb[0].mxu0
        %v2196 = vadd.f32 %v2083, %v2195
        %v2197 = vpop.f32.mrb[0].mxu0
        %v2198 = vadd.f32 %v2085, %v2197
        %v2199 = vpop.f32.mrb[0].mxu0
        %v2200 = vadd.f32 %v2087, %v2199
        %v2201 = vpop.f32.mrb[0].mxu0
        %v2202 = vadd.f32 %v2089, %v2201
        %2203 = vmatprep.mubr.bf16.mxu0 0
        %2204 = vmatmul.mubr.bf16.gmra.mrb[0].mxu0 %v1701
        %v2205 = vpop.f32.mrb[0].mxu0
        %v2206 = vadd.f32 %v2093, %v2205
        %v2207 = vpop.f32.mrb[0].mxu0
        %v2208 = vadd.f32 %v2095, %v2207
        %v2209 = vpop.f32.mrb[0].mxu0
        %v2210 = vadd.f32 %v2097, %v2209
        %v2211 = vpop.f32.mrb[0].mxu0
        %v2212 = vadd.f32 %v2099, %v2211
        %2213 = vmatprep.mubr.bf16.mxu0 0
        %2214 = vmatmul.mubr.bf16.gmra.mrb[0].mxu0 %v1704
        %v2215 = vpop.f32.mrb[0].mxu0
        %v2216 = vadd.f32 %v2103, %v2215
        %v2217 = vpop.f32.mrb[0].mxu0
        %v2218 = vadd.f32 %v2105, %v2217
        %v2219 = vpop.f32.mrb[0].mxu0
        %v2220 = vadd.f32 %v2107, %v2219
        %v2221 = vpop.f32.mrb[0].mxu0
        %v2222 = vadd.f32 %v2109, %v2221
        %2223 = vmatprep.mubr.bf16.mxu0 0
        %2224 = vmatmul.mubr.bf16.gmra.mrb[0].mxu0 %v1707
        %v2225 = vpop.f32.mrb[0].mxu0
        %v2226 = vadd.f32 %v2113, %v2225
        %v2227 = vpop.f32.mrb[0].mxu0
        %v2228 = vadd.f32 %v2115, %v2227
        %v2229 = vpop.f32.mrb[0].mxu0
        %v2230 = vadd.f32 %v2117, %v2229
        %v2231 = vpop.f32.mrb[0].mxu0
        %v2232 = vadd.f32 %v2119, %v2231
        %2233 = vdwg.mxu0
        %v2234 = vmax.f32 %v2156, 0.0
        %v2235 = vmax.f32 %v2158, 0.0
        %v2236 = vmax.f32 %v2160, 0.0
        %v2237 = vmax.f32 %v2162, 0.0
        %v2238 = vmax.f32 %v2166, 0.0
        %v2239 = vmax.f32 %v2168, 0.0
        %v2240 = vmax.f32 %v2170, 0.0
        %v2241 = vmax.f32 %v2172, 0.0
        %v2242 = vmax.f32 %v2176, 0.0
        %v2243 = vmax.f32 %v2178, 0.0
        %v2244 = vmax.f32 %v2180, 0.0
        %v2245 = vmax.f32 %v2182, 0.0
        %v2246 = vmax.f32 %v2186, 0.0
        %v2247 = vmax.f32 %v2188, 0.0
        %v2248 = vmax.f32 %v2190, 0.0
        %v2249 = vmax.f32 %v2192, 0.0
        %v2250 = vmax.f32 %v2196, 0.0
        %v2251 = vmax.f32 %v2198, 0.0
        %v2252 = vmax.f32 %v2200, 0.0
        %v2253 = vmax.f32 %v2202, 0.0
        %v2254 = vmax.f32 %v2206, 0.0
        %v2255 = vmax.f32 %v2208, 0.0
        %v2256 = vmax.f32 %v2210, 0.0
        %v2257 = vmax.f32 %v2212, 0.0
        %v2258 = vmax.f32 %v2216, 0.0
        %v2259 = vmax.f32 %v2218, 0.0
        %v2260 = vmax.f32 %v2220, 0.0
        %v2261 = vmax.f32 %v2222, 0.0
        %v2262 = vmax.f32 %v2226, 0.0
        %v2263 = vmax.f32 %v2228, 0.0
        %v2264 = vmax.f32 %v2230, 0.0
        %v2265 = vmax.f32 %v2232, 0.0
        %v2266 = vadd.f32 %v2234, %v2236
        %v2267 = vrot.slane %v2266, 4
        %v2268 = vadd.f32 %v2266, %v2267
        %v2269 = vrot.slane %v2268, 2
        %v2270 = vadd.f32 %v2268, %v2269
        %v2271 = vrot.slane %v2270, 1
        %v2272 = vadd.f32 %v2270, %v2271
        %v2273 = vadd.f32 %v2235, %v2237
        %v2274 = vrot.slane %v2273, 4
        %v2275 = vadd.f32 %v2273, %v2274
        %v2276 = vrot.slane %v2275, 2
        %v2277 = vadd.f32 %v2275, %v2276
        %v2278 = vrot.slane %v2277, 1
        %v2279 = vadd.f32 %v2277, %v2278
        %v2280 = vadd.f32 %v2238, %v2240
        %v2281 = vrot.slane %v2280, 4
        %v2282 = vadd.f32 %v2280, %v2281
        %v2283 = vrot.slane %v2282, 2
        %v2284 = vadd.f32 %v2282, %v2283
        %v2285 = vrot.slane %v2284, 1
        %v2286 = vadd.f32 %v2284, %v2285
        %v2287 = vadd.f32 %v2239, %v2241
        %v2288 = vrot.slane %v2287, 4
        %v2289 = vadd.f32 %v2287, %v2288
        %v2290 = vrot.slane %v2289, 2
        %v2291 = vadd.f32 %v2289, %v2290
        %v2292 = vrot.slane %v2291, 1
        %v2293 = vadd.f32 %v2291, %v2292
        %v2294 = vadd.f32 %v2242, %v2244
        %v2295 = vrot.slane %v2294, 4
        %v2296 = vadd.f32 %v2294, %v2295
        %v2297 = vrot.slane %v2296, 2
        %v2298 = vadd.f32 %v2296, %v2297
        %v2299 = vrot.slane %v2298, 1
        %v2300 = vadd.f32 %v2298, %v2299
        %v2301 = vadd.f32 %v2243, %v2245
        %v2302 = vrot.slane %v2301, 4
        %v2303 = vadd.f32 %v2301, %v2302
        %v2304 = vrot.slane %v2303, 2
        %v2305 = vadd.f32 %v2303, %v2304
        %v2306 = vrot.slane %v2305, 1
        %v2307 = vadd.f32 %v2305, %v2306
        %v2308 = vadd.f32 %v2246, %v2248
        %v2309 = vrot.slane %v2308, 4
        %v2310 = vadd.f32 %v2308, %v2309
        %v2311 = vrot.slane %v2310, 2
        %v2312 = vadd.f32 %v2310, %v2311
        %v2313 = vrot.slane %v2312, 1
        %v2314 = vadd.f32 %v2312, %v2313
        %v2315 = vadd.f32 %v2247, %v2249
        %v2316 = vrot.slane %v2315, 4
        %v2317 = vadd.f32 %v2315, %v2316
        %v2318 = vrot.slane %v2317, 2
        %v2319 = vadd.f32 %v2317, %v2318
        %v2320 = vrot.slane %v2319, 1
        %v2321 = vadd.f32 %v2319, %v2320
        %v2322 = vadd.f32 %v2250, %v2252
        %v2323 = vrot.slane %v2322, 4
        %v2324 = vadd.f32 %v2322, %v2323
        %v2325 = vrot.slane %v2324, 2
        %v2326 = vadd.f32 %v2324, %v2325
        %v2327 = vrot.slane %v2326, 1
        %v2328 = vadd.f32 %v2326, %v2327
        %v2329 = vadd.f32 %v2251, %v2253
        %v2330 = vrot.slane %v2329, 4
        %v2331 = vadd.f32 %v2329, %v2330
        %v2332 = vrot.slane %v2331, 2
        %v2333 = vadd.f32 %v2331, %v2332
        %v2334 = vrot.slane %v2333, 1
        %v2335 = vadd.f32 %v2333, %v2334
        %v2336 = vadd.f32 %v2254, %v2256
        %v2337 = vrot.slane %v2336, 4
        %v2338 = vadd.f32 %v2336, %v2337
        %v2339 = vrot.slane %v2338, 2
        %v2340 = vadd.f32 %v2338, %v2339
        %v2341 = vrot.slane %v2340, 1
        %v2342 = vadd.f32 %v2340, %v2341
        %v2343 = vadd.f32 %v2255, %v2257
        %v2344 = vrot.slane %v2343, 4
        %v2345 = vadd.f32 %v2343, %v2344
        %v2346 = vrot.slane %v2345, 2
        %v2347 = vadd.f32 %v2345, %v2346
        %v2348 = vrot.slane %v2347, 1
        %v2349 = vadd.f32 %v2347, %v2348
        %v2350 = vadd.f32 %v2258, %v2260
        %v2351 = vrot.slane %v2350, 4
        %v2352 = vadd.f32 %v2350, %v2351
        %v2353 = vrot.slane %v2352, 2
        %v2354 = vadd.f32 %v2352, %v2353
        %v2355 = vrot.slane %v2354, 1
        %v2356 = vadd.f32 %v2354, %v2355
        %v2357 = vadd.f32 %v2259, %v2261
        %v2358 = vrot.slane %v2357, 4
        %v2359 = vadd.f32 %v2357, %v2358
        %v2360 = vrot.slane %v2359, 2
        %v2361 = vadd.f32 %v2359, %v2360
        %v2362 = vrot.slane %v2361, 1
        %v2363 = vadd.f32 %v2361, %v2362
        %v2364 = vadd.f32 %v2262, %v2264
        %v2365 = vrot.slane %v2364, 4
        %v2366 = vadd.f32 %v2364, %v2365
        %v2367 = vrot.slane %v2366, 2
        %v2368 = vadd.f32 %v2366, %v2367
        %v2369 = vrot.slane %v2368, 1
        %v2370 = vadd.f32 %v2368, %v2369
        %v2371 = vadd.f32 %v2263, %v2265
        %v2372 = vrot.slane %v2371, 4
        %v2373 = vadd.f32 %v2371, %v2372
        %v2374 = vrot.slane %v2373, 2
        %v2375 = vadd.f32 %v2373, %v2374
        %v2376 = vrot.slane %v2375, 1
        %v2377 = vadd.f32 %v2375, %v2376
        %v2378 = vrcp.pop 16.0
        %v2379 = vmul.f32 %v2272, %v2378
        %v2380 = vmul.f32 %v2279, %v2378
        %v2381 = vmul.f32 %v2286, %v2378
        %v2382 = vmul.f32 %v2293, %v2378
        %v2383 = vmul.f32 %v2300, %v2378
        %v2384 = vmul.f32 %v2307, %v2378
        %v2385 = vmul.f32 %v2314, %v2378
        %v2386 = vmul.f32 %v2321, %v2378
        %v2387 = vmul.f32 %v2328, %v2378
        %v2388 = vmul.f32 %v2335, %v2378
        %v2389 = vmul.f32 %v2342, %v2378
        %v2390 = vmul.f32 %v2349, %v2378
        %v2391 = vmul.f32 %v2356, %v2378
        %v2392 = vmul.f32 %v2363, %v2378
        %v2393 = vmul.f32 %v2370, %v2378
        %v2394 = vmul.f32 %v2377, %v2378
        %vm2411 = vcmask 1041409
        %v2412 = vsel %vm2411, %v2381, %v2379
        %vm2413 = vcmask 1042434
        %v2414 = vsel %vm2413, %v2383, %v2412
        %vm2415 = vcmask 1043459
        %v2416 = vsel %vm2415, %v2385, %v2414
        %vm2417 = vcmask 1044484
        %v2418 = vsel %vm2417, %v2387, %v2416
        %vm2419 = vcmask 1045509
        %v2420 = vsel %vm2419, %v2389, %v2418
        %vm2421 = vcmask 1046534
        %v2422 = vsel %vm2421, %v2391, %v2420
        %vm2423 = vcmask 1047559
        %v2424 = vsel %vm2423, %v2393, %v2422
        %v2425 = vsel %vm2411, %v2382, %v2380
        %v2426 = vsel %vm2413, %v2384, %v2425
        %v2427 = vsel %vm2415, %v2386, %v2426
        %v2428 = vsel %vm2417, %v2388, %v2427
        %v2429 = vsel %vm2419, %v2390, %v2428
        %v2430 = vsel %vm2421, %v2392, %v2429
        %v2431 = vsel %vm2423, %v2394, %v2430
        %2434 = vst [vmem:[%s289] sm:$0xff] %v2424
        %2435 = vst [vmem:[%s289 + $0x8] sm:$0xff] %v2431
        %s2436 = sand.u32 %s182, 1
        %s2437 = scalar_lea.sflag [#allocation4], %s2436
        %s2438 = sand.u32 %s182, 1
        %s2439 = smul.addr %s2438, 16
        %s2440 = scalar_lea.vmem [#allocation5], %s2439
        // Predicated region
        $region53: #{tpu_custom_call.1} parent=47 // pred_check
          %p2441 = pneg %p192
        $region54: #{tpu_custom_call.1} parent=47 // pred_check_branch
          %2443 = sbr.rel (%p2441) target = $region56
        $region55: #{tpu_custom_call.1} parent=47 // pred_region
          %s2445 = ssub.s32 256, 256
          %2446 = vsyncadd %s2437, %s2445
          %s2447 = smul.addr %s22, 2
          %s2448 = smul.addr %s2447, 128
          %s2449 = scalar_lea.hbm %s7, %s2448
          %s2451 = sshll.u32 %s2440, 4
          %s2452 = int_to_ptr.vmem [resolvable:$true] %s2451
          %2454 = dma.vmem_to_hbm [thread:$0]  %s2452, 256, %s2449, %s2437
        $region56: #{tpu_custom_call.1} parent=47 // pred_fallthru
          _
      $region48: #{tpu_custom_call.1} parent=5 // pred_fallthru
        _
      %p2455 = scmp.le.s32.totalorder 2, %s17
      // Predicated region
      $region57: #{tpu_custom_call.1} parent=5 // pred_check
        %p2456 = pneg %p2455
      $region58: #{tpu_custom_call.1} parent=5 // pred_check_branch
        %2458 = sbr.rel (%p2456) target = $region60
      $region59: #{tpu_custom_call.1} parent=5 // pred_region
        %s2459 = ssub.s32 %s17, 2
        // Predicated region
        $region61: #{tpu_custom_call.1} parent=59 // pred_check
          %p2460 = pneg %p198
        $region62: #{tpu_custom_call.1} parent=59 // pred_check_branch
          %2462 = sbr.rel (%p2460) target = $region64
        $region63: #{tpu_custom_call.1} parent=59 // pred_region
          %s2463 = sand.u32 %s183, 1
          %s2464 = scalar_lea.sflag [#allocation4], %s2463
          %s2465 = sand.u32 %s183, 1
          %s2466 = smul.addr %s2465, 16
          %s2467 = scalar_lea.vmem [#allocation5], %s2466
          %2468 = dma.done %s2464, 256
        $region64: #{tpu_custom_call.1} parent=59 // pred_fallthru
          _
      $region60: #{tpu_custom_call.1} parent=5 // pred_fallthru
        _
    $region6: #{tpu_custom_call.1} parent=1 // loop_footer
      %s21 = sadd.s32 1, %s17
    $region7: #{tpu_custom_call.1} parent=1 // loop_footer_branch
      %16 = sbr.rel target = $region3
    $region8: #{tpu_custom_call.1} parent=1 // loop_exit
      _
    %2469 = vsyncpa [#allocation3], 1
    %s2470 = scalar_lea.sflag [#allocation3], 1
    %2471 = vsyncpa %s2470, 1
    %2472 = vsyncpa [#allocation4], 1
    %s2473 = scalar_lea.sflag [#allocation4], 1
    %2474 = vsyncpa %s2473, 1

</llo_original>
